<compile_context>
chip_gen: v6e
topology: v6e:2x2x1
jax: 0.10.0
libtpu: 0.0.40
codegen_flags: <defaults>
</compile_context>

<pallas_src>
import functools

import jax
import jax.numpy as jnp
from jax.experimental import pallas as pl
from jax.experimental.pallas import tpu as pltpu

D_IN_EACH = 512          # feat_sound / feat_img feature dim
D_CAT     = 1024         # concatenated dim (fc1 input)
D_H1      = 512          # fc1 out
D_H2      = 128          # fc2 out
D_OUT     = 2            # fc3 out
D_H2_PAD  = 128          # fc3 weight kept at a full 128-lane MXU shape
TB_MAX    = 1024         # batch tile cap (2048 is also fine on v6e/v7x)
VMEM_LIMIT_BYTES = 32 * 1024 * 1024


def _round_up(x, m):
    return (x + m - 1) // m * m


def grounding_kernel(xs_ref, xi_ref, w1a_ref, w1b_ref, b1_ref,
                     w2_ref, b2_ref, w3_ref, b3_ref, out_ref):
    """Fused 3-layer MLP on one batch tile:
       relu(relu([xs|xi]@W1+b1)@W2+b2)@(2*W3) + 2*b3   (the *2 is pre-folded)."""
    xs = xs_ref[...].astype(jnp.bfloat16)                          # [TB, 512]
    xi = xi_ref[...].astype(jnp.bfloat16)                          # [TB, 512]

    # fc1: split-K over the (virtual) concat, f32 accumulation on the MXU.
    h1 = jnp.dot(xs, w1a_ref[...], preferred_element_type=jnp.float32)
    h1 = h1 + jnp.dot(xi, w1b_ref[...], preferred_element_type=jnp.float32)
    h1 = jnp.maximum(h1 + b1_ref[...], 0.0).astype(jnp.bfloat16)   # [TB, 512]

    # fc2
    h2 = jnp.dot(h1, w2_ref[...], preferred_element_type=jnp.float32)
    h2 = jnp.maximum(h2 + b2_ref[...], 0.0).astype(jnp.bfloat16)   # [TB, 128]

    # fc3 (weights lane-padded 2 -> 128 for the MXU; *2 already folded in).
    g = jnp.dot(h2, w3_ref[...], preferred_element_type=jnp.float32)
    g = g + b3_ref[...]                                            # [TB, 128]
    out_ref[...] = g[:, :D_OUT].astype(out_ref.dtype)              # [TB, 2]


def prepare_params(params):
    """One-time parameter prep: split W1, cast to bf16, pad fc3 to 128 lanes,
    fold the final *2 into fc3, reshape biases to (1, N)."""
    w1, b1, w2, b2, w3, b3 = params
    w1a = w1[:D_IN_EACH, :].astype(jnp.bfloat16)                   # [512, 512]
    w1b = w1[D_IN_EACH:, :].astype(jnp.bfloat16)                   # [512, 512]
    w2b = w2.astype(jnp.bfloat16)                                  # [512, 128]
    # Fold the output scale of 2.0 into fc3 weight/bias (zero-padded lanes).
    w3_pad = jnp.zeros((D_H2, D_H2_PAD), jnp.bfloat16).at[:, :D_OUT].set(
        (2.0 * w3).astype(jnp.bfloat16))                           # [128, 128]
    b3_pad = jnp.zeros((1, D_H2_PAD), jnp.float32).at[:, :D_OUT].set(
        (2.0 * b3).astype(jnp.float32))                            # [1, 128]
    return (w1a, w1b, b1.reshape(1, D_H1).astype(jnp.float32),
            w2b, b2.reshape(1, D_H2).astype(jnp.float32),
            w3_pad, b3_pad)


@functools.partial(jax.jit, static_argnames=("tb_max",))
def grounding_forward(feat_sound, feat_img, prepared_params, tb_max=TB_MAX):
    """Batch-tiled fused MLP forward. Returns [B, 2] float32."""
    B = feat_sound.shape[0]
    w1a, w1b, b1, w2, b2, w3_pad, b3_pad = prepared_params

    # Batch tile: multiple of 16 sublanes (bf16 packing), capped at tb_max and
    # at ceil(B/2) so large batches always get >= 2 grid steps (lets the
    # "parallel" axis shard across v7x's two TensorCores).  No input padding:
    # the grid is cdiv(B, tb) and Pallas clips the partial last block.
    tb = min(tb_max, _round_up(pl.cdiv(B, 2), 16))
    grid = (pl.cdiv(B, tb),)

    feat_spec = pl.BlockSpec((tb, D_IN_EACH), lambda i: (i, 0))
    const = lambda shape: pl.BlockSpec(shape, lambda i: (0, 0))
    in_specs = [
        feat_spec,                        # feat_sound tile
        feat_spec,                        # feat_img tile
        const((D_IN_EACH, D_H1)),         # w1a (VMEM-resident)
        const((D_IN_EACH, D_H1)),         # w1b (VMEM-resident)
        const((1, D_H1)),                 # b1
        const((D_H1, D_H2)),              # w2
        const((1, D_H2)),                 # b2
        const((D_H2, D_H2_PAD)),          # w3 (lane-padded, *2 folded)
        const((1, D_H2_PAD)),             # b3 (lane-padded, *2 folded)
    ]
    # Narrow output block: last dim == full array dim (2) -> allowed; masked
    # stores are cheap here and this removes the 128-lane f32 writeback slab.
    out_specs = pl.BlockSpec((tb, D_OUT), lambda i: (i, 0))

    in_item = feat_sound.dtype.itemsize
    flops = 2 * B * (D_CAT * D_H1 + D_H1 * D_H2 + D_H2 * D_H2_PAD)
    bytes_accessed = (
        2 * B * D_IN_EACH * in_item                                # feat in
        + (D_CAT * D_H1 + D_H1 * D_H2 + D_H2 * D_H2_PAD) * 2       # weights bf16
        + B * D_OUT * 4)                                           # out f32

    out = pl.pallas_call(
        grounding_kernel,
        out_shape=jax.ShapeDtypeStruct((B, D_OUT), jnp.float32),
        grid=grid,
        in_specs=in_specs,
        out_specs=out_specs,
        compiler_params=pltpu.CompilerParams(
            dimension_semantics=("parallel",),
            vmem_limit_bytes=VMEM_LIMIT_BYTES),
        cost_estimate=pl.CostEstimate(
            flops=flops, transcendentals=0, bytes_accessed=bytes_accessed),
    )(feat_sound, feat_img, w1a, w1b, b1, w2, b2, w3_pad, b3_pad)

    return out                                                      # [B, 2]


def init_params(key):
    """Deterministic synthetic init matching nn.Linear shapes (stored
    transposed: [in_features, out_features])."""
    ks = jax.random.split(key, 6)
    scale = 0.02
    w1 = scale * jax.random.normal(ks[0], (D_CAT, D_H1), jnp.float32)
    b1 = scale * jax.random.normal(ks[1], (D_H1,), jnp.float32)
    w2 = scale * jax.random.normal(ks[2], (D_H1, D_H2), jnp.float32)
    b2 = scale * jax.random.normal(ks[3], (D_H2,), jnp.float32)
    w3 = scale * jax.random.normal(ks[4], (D_H2, D_OUT), jnp.float32)
    b3 = scale * jax.random.normal(ks[5], (D_OUT,), jnp.float32)
    return (w1, b1, w2, b2, w3, b3)


def grounding_ref(feat_sound, feat_img, params):
    """Pure-JAX f32 reference of the PyTorch forward for verification."""
    w1, b1, w2, b2, w3, b3 = params
    feat = jnp.concatenate([feat_sound, feat_img], axis=-1)
    h1 = jnp.maximum(feat @ w1 + b1, 0.0)
    h2 = jnp.maximum(h1 @ w2 + b2, 0.0)
    return (h2 @ w3 + b3) * 2.0


if __name__ == "__main__":
    key = jax.random.PRNGKey(0)
    k_s, k_i, k_p = jax.random.split(key, 3)

    params = init_params(k_p)
    prepared = prepare_params(params)   # one-time weight prep (split/cast/pad/fold *2)

    # Test 1: small f32 batch (expected input scale ~N(0,1); bf16 MXU
    # operands with f32 accumulation -> relaxed tolerance).
    B = 8
    feat_sound = jax.random.normal(k_s, (B, D_IN_EACH), jnp.float32)
    feat_img = jax.random.normal(k_i, (B, D_IN_EACH), jnp.float32)
    out = jax.block_until_ready(grounding_forward(feat_sound, feat_img, prepared))
    ref = grounding_ref(feat_sound, feat_img, params)
    assert out.shape == (B, D_OUT), out.shape
    assert jnp.allclose(out, ref, atol=1e-2, rtol=1e-2), \
        f"max abs err {jnp.max(jnp.abs(out - ref))}"

    # Test 2: non-tile-multiple batch (exercises the partial last block — no
    # wrapper-side padding copy) with bf16 inputs (the preferred producer
    # dtype); reference uses the same bf16-quantized inputs upcast to f32.
    B2 = 13
    fs2 = jax.random.normal(k_s, (B2, D_IN_EACH), jnp.float32).astype(jnp.bfloat16)
    fi2 = jax.random.normal(k_i, (B2, D_IN_EACH), jnp.float32).astype(jnp.bfloat16)
    out2 = jax.block_until_ready(grounding_forward(fs2, fi2, prepared))
    ref2 = grounding_ref(fs2.astype(jnp.float32), fi2.astype(jnp.float32), params)
    assert out2.shape == (B2, D_OUT), out2.shape
    assert jnp.allclose(out2, ref2, atol=1e-2, rtol=1e-2), \
        f"max abs err {jnp.max(jnp.abs(out2 - ref2))}"

    print("KERNEL_OK")
</pallas_src>

<mosaic_0001>
module attributes {stable_mosaic.version = 11 : i64} {
  func.func @grounding_kernel(%arg0: i32, %arg1: memref<16x512xf32, #tpu.memory_space<vmem>>, %arg2: memref<16x512xf32, #tpu.memory_space<vmem>>, %arg3: memref<512x512xbf16, #tpu.memory_space<vmem>>, %arg4: memref<512x512xbf16, #tpu.memory_space<vmem>>, %arg5: memref<1x512xf32, #tpu.memory_space<vmem>>, %arg6: memref<512x128xbf16, #tpu.memory_space<vmem>>, %arg7: memref<1x128xf32, #tpu.memory_space<vmem>>, %arg8: memref<128x128xbf16, #tpu.memory_space<vmem>>, %arg9: memref<1x128xf32, #tpu.memory_space<vmem>>, %arg10: memref<16x2xf32, #tpu.memory_space<vmem>>) attributes {dimension_semantics = [#tpu.dimension_semantics<parallel>], iteration_bounds = array<i64: 1>, scalar_prefetch = 0 : i64, scratch_operands = 0 : i64, tpu.core_type = #tpu.core_type<tc>, window_params = [{transform_indices = @transform_0, window_bounds = array<i64: 16, 512>}, {transform_indices = @transform_1, window_bounds = array<i64: 16, 512>}, {pipeline_mode = #tpu.pipeline_mode<synchronous>, transform_indices = @transform_2, window_bounds = array<i64: 512, 512>}, {pipeline_mode = #tpu.pipeline_mode<synchronous>, transform_indices = @transform_3, window_bounds = array<i64: 512, 512>}, {pipeline_mode = #tpu.pipeline_mode<synchronous>, transform_indices = @transform_4, window_bounds = array<i64: 1, 512>}, {pipeline_mode = #tpu.pipeline_mode<synchronous>, transform_indices = @transform_5, window_bounds = array<i64: 512, 128>}, {pipeline_mode = #tpu.pipeline_mode<synchronous>, transform_indices = @transform_6, window_bounds = array<i64: 1, 128>}, {pipeline_mode = #tpu.pipeline_mode<synchronous>, transform_indices = @transform_7, window_bounds = array<i64: 128, 128>}, {pipeline_mode = #tpu.pipeline_mode<synchronous>, transform_indices = @transform_8, window_bounds = array<i64: 1, 128>}, {transform_indices = @transform_9, window_bounds = array<i64: 16, 2>}]} {
    %c0 = arith.constant 0 : index
    %c0_0 = arith.constant 0 : index
    %0 = vector.load %arg1[%c0, %c0_0] : memref<16x512xf32, #tpu.memory_space<vmem>>, vector<16x512xf32>
    %1 = arith.truncf %0 : vector<16x512xf32> to vector<16x512xbf16>
    %c0_1 = arith.constant 0 : index
    %c0_2 = arith.constant 0 : index
    %2 = vector.load %arg2[%c0_1, %c0_2] : memref<16x512xf32, #tpu.memory_space<vmem>>, vector<16x512xf32>
    %3 = arith.truncf %2 : vector<16x512xf32> to vector<16x512xbf16>
    %c0_3 = arith.constant 0 : index
    %c0_4 = arith.constant 0 : index
    %4 = vector.load %arg3[%c0_3, %c0_4] : memref<512x512xbf16, #tpu.memory_space<vmem>>, vector<512x512xbf16>
    %cst = arith.constant dense<0.000000e+00> : vector<16x512xf32>
    %5 = tpu.matmul %1, %4, %cst {dimension_numbers = #tpu.dot_dimension_numbers<[1], [0], [0], [1], [0, 0, 1, 1], [], []>} : vector<16x512xbf16>, vector<512x512xbf16>, vector<16x512xf32> -> vector<16x512xf32>
    %c0_5 = arith.constant 0 : index
    %c0_6 = arith.constant 0 : index
    %6 = vector.load %arg4[%c0_5, %c0_6] : memref<512x512xbf16, #tpu.memory_space<vmem>>, vector<512x512xbf16>
    %cst_7 = arith.constant dense<0.000000e+00> : vector<16x512xf32>
    %7 = tpu.matmul %3, %6, %cst_7 {dimension_numbers = #tpu.dot_dimension_numbers<[1], [0], [0], [1], [0, 0, 1, 1], [], []>} : vector<16x512xbf16>, vector<512x512xbf16>, vector<16x512xf32> -> vector<16x512xf32>
    %8 = arith.addf %5, %7 : vector<16x512xf32>
    %c0_8 = arith.constant 0 : index
    %c0_9 = arith.constant 0 : index
    %9 = vector.load %arg5[%c0_8, %c0_9] : memref<1x512xf32, #tpu.memory_space<vmem>>, vector<1x512xf32>
    %10 = vector.broadcast %9 : vector<1x512xf32> to vector<16x512xf32>
    %11 = arith.addf %8, %10 : vector<16x512xf32>
    %cst_10 = arith.constant 0.000000e+00 : f32
    %12 = vector.broadcast %cst_10 : f32 to vector<16x512xf32>
    %13 = arith.maximumf %11, %12 : vector<16x512xf32>
    %14 = arith.truncf %13 : vector<16x512xf32> to vector<16x512xbf16>
    %c0_11 = arith.constant 0 : index
    %c0_12 = arith.constant 0 : index
    %15 = vector.load %arg6[%c0_11, %c0_12] : memref<512x128xbf16, #tpu.memory_space<vmem>>, vector<512x128xbf16>
    %cst_13 = arith.constant dense<0.000000e+00> : vector<16x128xf32>
    %16 = tpu.matmul %14, %15, %cst_13 {dimension_numbers = #tpu.dot_dimension_numbers<[1], [0], [0], [1], [0, 0, 1, 1], [], []>} : vector<16x512xbf16>, vector<512x128xbf16>, vector<16x128xf32> -> vector<16x128xf32>
    %c0_14 = arith.constant 0 : index
    %c0_15 = arith.constant 0 : index
    %17 = vector.load %arg7[%c0_14, %c0_15] : memref<1x128xf32, #tpu.memory_space<vmem>>, vector<1x128xf32>
    %18 = vector.broadcast %17 : vector<1x128xf32> to vector<16x128xf32>
    %19 = arith.addf %16, %18 : vector<16x128xf32>
    %cst_16 = arith.constant 0.000000e+00 : f32
    %20 = vector.broadcast %cst_16 : f32 to vector<16x128xf32>
    %21 = arith.maximumf %19, %20 : vector<16x128xf32>
    %22 = arith.truncf %21 : vector<16x128xf32> to vector<16x128xbf16>
    %c0_17 = arith.constant 0 : index
    %c0_18 = arith.constant 0 : index
    %23 = vector.load %arg8[%c0_17, %c0_18] : memref<128x128xbf16, #tpu.memory_space<vmem>>, vector<128x128xbf16>
    %cst_19 = arith.constant dense<0.000000e+00> : vector<16x128xf32>
    %24 = tpu.matmul %22, %23, %cst_19 {dimension_numbers = #tpu.dot_dimension_numbers<[1], [0], [0], [1], [0, 0, 1, 1], [], []>} : vector<16x128xbf16>, vector<128x128xbf16>, vector<16x128xf32> -> vector<16x128xf32>
    %c0_20 = arith.constant 0 : index
    %c0_21 = arith.constant 0 : index
    %25 = vector.load %arg9[%c0_20, %c0_21] : memref<1x128xf32, #tpu.memory_space<vmem>>, vector<1x128xf32>
    %26 = vector.broadcast %25 : vector<1x128xf32> to vector<16x128xf32>
    %27 = arith.addf %24, %26 : vector<16x128xf32>
    %28 = vector.extract_strided_slice %27 {offsets = [0, 0], sizes = [16, 2], strides = [1, 1]} : vector<16x128xf32> to vector<16x2xf32>
    %c0_22 = arith.constant 0 : index
    %c0_23 = arith.constant 0 : index
    %29 = vector.load %arg10[%c0_22, %c0_23] : memref<16x2xf32, #tpu.memory_space<vmem>>, vector<16x2xf32>
    tpu.vector_store %arg10[%c0_22, %c0_23], %28 {strides = array<i32>} : memref<16x2xf32, #tpu.memory_space<vmem>>, vector<16x2xf32>,
    return
  }
  func.func @transform_0(%arg0: i32) -> (i32, i32) {
    %c0_i32 = arith.constant 0 : i32
    %c0_i32_0 = arith.constant 0 : i32
    return %arg0, %c0_i32 : i32, i32
  }
  func.func @transform_1(%arg0: i32) -> (i32, i32) {
    %c0_i32 = arith.constant 0 : i32
    %c0_i32_0 = arith.constant 0 : i32
    return %arg0, %c0_i32 : i32, i32
  }
  func.func @transform_2(%arg0: i32) -> (i32, i32) {
    %c0_i32 = arith.constant 0 : i32
    %c0_i32_0 = arith.constant 0 : i32
    %c0_i32_1 = arith.constant 0 : i32
    return %c0_i32, %c0_i32_0 : i32, i32
  }
  func.func @transform_3(%arg0: i32) -> (i32, i32) {
    %c0_i32 = arith.constant 0 : i32
    %c0_i32_0 = arith.constant 0 : i32
    %c0_i32_1 = arith.constant 0 : i32
    return %c0_i32, %c0_i32_0 : i32, i32
  }
  func.func @transform_4(%arg0: i32) -> (i32, i32) {
    %c0_i32 = arith.constant 0 : i32
    %c0_i32_0 = arith.constant 0 : i32
    %c0_i32_1 = arith.constant 0 : i32
    return %c0_i32, %c0_i32_0 : i32, i32
  }
  func.func @transform_5(%arg0: i32) -> (i32, i32) {
    %c0_i32 = arith.constant 0 : i32
    %c0_i32_0 = arith.constant 0 : i32
    %c0_i32_1 = arith.constant 0 : i32
    return %c0_i32, %c0_i32_0 : i32, i32
  }
  func.func @transform_6(%arg0: i32) -> (i32, i32) {
    %c0_i32 = arith.constant 0 : i32
    %c0_i32_0 = arith.constant 0 : i32
    %c0_i32_1 = arith.constant 0 : i32
    return %c0_i32, %c0_i32_0 : i32, i32
  }
  func.func @transform_7(%arg0: i32) -> (i32, i32) {
    %c0_i32 = arith.constant 0 : i32
    %c0_i32_0 = arith.constant 0 : i32
    %c0_i32_1 = arith.constant 0 : i32
    return %c0_i32, %c0_i32_0 : i32, i32
  }
  func.func @transform_8(%arg0: i32) -> (i32, i32) {
    %c0_i32 = arith.constant 0 : i32
    %c0_i32_0 = arith.constant 0 : i32
    %c0_i32_1 = arith.constant 0 : i32
    return %c0_i32, %c0_i32_0 : i32, i32
  }
  func.func @transform_9(%arg0: i32) -> (i32, i32) {
    %c0_i32 = arith.constant 0 : i32
    %c0_i32_0 = arith.constant 0 : i32
    return %arg0, %c0_i32 : i32, i32
  }
}

</mosaic_0001>

<llo_original>
// kernel: grounding_forward.1
$region0: #{grounding_forward.1}
  #allocation0 [shape = 'u32[]', space=smem, size = 0x4, offset = 0x4, fixed_abs, tag = 'smem constant byte address 0x4 - core index']
  #allocation1 [shape = 'u32[144,128]{1,0:T(1,128)}', space=vmem, size = 0x12000, scoped, tag = 'internal scratch']
  %s0 = inlined_call_operand.hbm [shape: f32[8,512], index: 0, kind: input, shape index: {}]
  %s1 = inlined_call_operand.hbm [shape: f32[8,512], index: 1, kind: input, shape index: {}]
  %s2 = inlined_call_operand.hbm [shape: bf16[512,512], index: 2, kind: input, shape index: {}]
  %s3 = inlined_call_operand.hbm [shape: bf16[512,512], index: 3, kind: input, shape index: {}]
  %s4 = inlined_call_operand.vmem [shape: f32[1,512], index: 4, kind: input, shape index: {}]
  %s5 = inlined_call_operand.hbm [shape: bf16[512,128], index: 5, kind: input, shape index: {}]
  %s6 = inlined_call_operand.vmem [shape: f32[1,128], index: 6, kind: input, shape index: {}]
  %s7 = inlined_call_operand.hbm [shape: bf16[128,128], index: 7, kind: input, shape index: {}]
  %s8 = inlined_call_operand.vmem [shape: f32[1,128], index: 8, kind: input, shape index: {}]
  %s9 = inlined_call_operand.vmem [shape: f32[8,2], index: 9, kind: output, shape index: {}]
  %s10 = sld [smem:[#allocation0]]
  $region104: #{grounding_forward.1} parent=0
    _
  %s12 = ssub.s32 1, %s10
  %s13 = scalar_select 0, %s12, %s10
  $region1: #{grounding_forward.1} parent=0
    #allocation2 [shape = 'u8[32768]{0}', space=vmem, size = 0x8000, scoped, tag = 'input window, operand 0, single buffered']
    #allocation3 [shape = 's32[1]{0}', space=sflag, size = 0x4, scoped, tag = 'scoped memory for grounding_forward.1']
    #allocation4 [shape = 'u8[32768]{0}', space=vmem, size = 0x8000, scoped, tag = 'input window, operand 1, single buffered']
    #allocation5 [shape = 's32[1]{0}', space=sflag, size = 0x4, scoped, tag = 'scoped memory for grounding_forward.1']
    #allocation6 [shape = 'u8[524288]{0}', space=vmem, size = 0x80000, scoped, tag = 'input window, operand 2, single buffered']
    #allocation7 [shape = 'u8[524288]{0}', space=vmem, size = 0x80000, scoped, tag = 'input window, operand 3, single buffered']
    #allocation8 [shape = 's32[1]{0}', space=sflag, size = 0x4, scoped, tag = 'scoped memory for grounding_forward.1']
    #allocation9 [shape = 'u8[131072]{0}', space=vmem, size = 0x20000, scoped, tag = 'input window, operand 5, single buffered']
    #allocation10 [shape = 'u8[32768]{0}', space=vmem, size = 0x8000, scoped, tag = 'input window, operand 7, single buffered']
    #allocation11 [shape = 's32[1]{0}', space=sflag, size = 0x4, scoped, tag = 'scoped memory for grounding_forward.1']
    #allocation12 [shape = 'u8[8192]{0}', space=vmem, size = 0x2000, scoped, tag = 'output window, operand 0, single buffered']
    %14 = vsyncpa [#allocation3], 0
    %15 = vsyncpa [#allocation5], 0
    %16 = vsyncpa [#allocation8], 0
    %17 = vsyncpa [#allocation11], 0
    // Predicated region
    $region2: #{grounding_forward.1} parent=1 // pred_check
      _
    $region3: #{grounding_forward.1} parent=1 // pred_check_branch
      %19 = sbr.rel (0) target = $region5
    $region4: #{grounding_forward.1} parent=1 // pred_region
      %s21 = ssub.s32 1024, 512
      %22 = vsyncadd [#allocation3], %s21
      %s23 = sshll.u32 [#allocation2], 4
      %s24 = int_to_ptr.vmem [resolvable:$true] %s23
      %29 = dma.hbm_to_vmem [thread:$0]  %s0, 512, %s24, [#allocation3], 512, 512, 32
    $region5: #{grounding_forward.1} parent=1 // pred_fallthru
      _
    // Predicated region
    $region6: #{grounding_forward.1} parent=1 // pred_check
      _
    $region7: #{grounding_forward.1} parent=1 // pred_check_branch
      %31 = sbr.rel (0) target = $region9
    $region8: #{grounding_forward.1} parent=1 // pred_region
      %s33 = ssub.s32 1024, 512
      %34 = vsyncadd [#allocation5], %s33
      %s35 = sshll.u32 [#allocation4], 4
      %s36 = int_to_ptr.vmem [resolvable:$true] %s35
      %41 = dma.hbm_to_vmem [thread:$0]  %s1, 512, %s36, [#allocation5], 512, 512, 32
    $region9: #{grounding_forward.1} parent=1 // pred_fallthru
      _
    // Predicated region
    $region10: #{grounding_forward.1} parent=1 // pred_check
      _
    $region11: #{grounding_forward.1} parent=1 // pred_check_branch
      %43 = sbr.rel (0) target = $region13
    $region12: #{grounding_forward.1} parent=1 // pred_region
      %s45 = ssub.s32 16384, 16384
      %46 = vsyncadd [#allocation5], %s45
      %s47 = sshll.u32 [#allocation6], 4
      %s48 = int_to_ptr.vmem [resolvable:$true] %s47
      %53 = dma.hbm_to_vmem [thread:$0]  %s2, 16384, %s48, [#allocation5], 256, 256, 16
    $region13: #{grounding_forward.1} parent=1 // pred_fallthru
      _
    // Predicated region
    $region14: #{grounding_forward.1} parent=1 // pred_check
      _
    $region15: #{grounding_forward.1} parent=1 // pred_check_branch
      %55 = sbr.rel (0) target = $region17
    $region16: #{grounding_forward.1} parent=1 // pred_region
      %s57 = ssub.s32 16384, 16384
      %58 = vsyncadd [#allocation8], %s57
      %s59 = sshll.u32 [#allocation7], 4
      %s60 = int_to_ptr.vmem [resolvable:$true] %s59
      %65 = dma.hbm_to_vmem [thread:$0]  %s3, 16384, %s60, [#allocation8], 256, 256, 16
    $region17: #{grounding_forward.1} parent=1 // pred_fallthru
      _
    // Predicated region
    $region18: #{grounding_forward.1} parent=1 // pred_check
      _
    $region19: #{grounding_forward.1} parent=1 // pred_check_branch
      %67 = sbr.rel (0) target = $region21
    $region20: #{grounding_forward.1} parent=1 // pred_region
      _
    $region21: #{grounding_forward.1} parent=1 // pred_fallthru
      _
    // Predicated region
    $region22: #{grounding_forward.1} parent=1 // pred_check
      _
    $region23: #{grounding_forward.1} parent=1 // pred_check_branch
      %69 = sbr.rel (0) target = $region25
    $region24: #{grounding_forward.1} parent=1 // pred_region
      %s71 = ssub.s32 4096, 4096
      %72 = vsyncadd [#allocation8], %s71
      %s73 = sshll.u32 [#allocation9], 4
      %s74 = int_to_ptr.vmem [resolvable:$true] %s73
      %79 = dma.hbm_to_vmem [thread:$0]  %s5, 4096, %s74, [#allocation8], 64, 64, 4
    $region25: #{grounding_forward.1} parent=1 // pred_fallthru
      _
    // Predicated region
    $region26: #{grounding_forward.1} parent=1 // pred_check
      _
    $region27: #{grounding_forward.1} parent=1 // pred_check_branch
      %81 = sbr.rel (0) target = $region29
    $region28: #{grounding_forward.1} parent=1 // pred_region
      _
    $region29: #{grounding_forward.1} parent=1 // pred_fallthru
      _
    // Predicated region
    $region30: #{grounding_forward.1} parent=1 // pred_check
      _
    $region31: #{grounding_forward.1} parent=1 // pred_check_branch
      %83 = sbr.rel (0) target = $region33
    $region32: #{grounding_forward.1} parent=1 // pred_region
      %s85 = ssub.s32 1024, 1024
      %86 = vsyncadd [#allocation11], %s85
      %s87 = sshll.u32 [#allocation10], 4
      %s88 = int_to_ptr.vmem [resolvable:$true] %s87
      %93 = dma.hbm_to_vmem [thread:$0]  %s7, 1024, %s88, [#allocation11], 64, 64, 4
    $region33: #{grounding_forward.1} parent=1 // pred_fallthru
      _
    // Predicated region
    $region34: #{grounding_forward.1} parent=1 // pred_check
      _
    $region35: #{grounding_forward.1} parent=1 // pred_check_branch
      %95 = sbr.rel (0) target = $region37
    $region36: #{grounding_forward.1} parent=1 // pred_region
      _
    $region37: #{grounding_forward.1} parent=1 // pred_fallthru
      _
    // Predicated region
    $region38: #{grounding_forward.1} parent=1 // pred_check
      _
    $region39: #{grounding_forward.1} parent=1 // pred_check_branch
      %97 = sbr.rel (0) target = $region41
    $region40: #{grounding_forward.1} parent=1 // pred_region
      %98 = dma.done [#allocation3], 1024
    $region41: #{grounding_forward.1} parent=1 // pred_fallthru
      _
    // Predicated region
    $region42: #{grounding_forward.1} parent=1 // pred_check
      _
    $region43: #{grounding_forward.1} parent=1 // pred_check_branch
      %100 = sbr.rel (0) target = $region45
    $region44: #{grounding_forward.1} parent=1 // pred_region
      %101 = dma.done [#allocation5], 1024
    $region45: #{grounding_forward.1} parent=1 // pred_fallthru
      _
    // Predicated region
    $region46: #{grounding_forward.1} parent=1 // pred_check
      _
    $region47: #{grounding_forward.1} parent=1 // pred_check_branch
      %103 = sbr.rel (0) target = $region49
    $region48: #{grounding_forward.1} parent=1 // pred_region
      %104 = dma.done [#allocation5], 16384
    $region49: #{grounding_forward.1} parent=1 // pred_fallthru
      _
    // Predicated region
    $region50: #{grounding_forward.1} parent=1 // pred_check
      _
    $region51: #{grounding_forward.1} parent=1 // pred_check_branch
      %106 = sbr.rel (0) target = $region53
    $region52: #{grounding_forward.1} parent=1 // pred_region
      %107 = dma.done [#allocation8], 16384
    $region53: #{grounding_forward.1} parent=1 // pred_fallthru
      _
    // Predicated region
    $region54: #{grounding_forward.1} parent=1 // pred_check
      _
    $region55: #{grounding_forward.1} parent=1 // pred_check_branch
      %109 = sbr.rel (0) target = $region57
    $region56: #{grounding_forward.1} parent=1 // pred_region
      %110 = dma.done [#allocation8], 4096
    $region57: #{grounding_forward.1} parent=1 // pred_fallthru
      _
    // Predicated region
    $region58: #{grounding_forward.1} parent=1 // pred_check
      _
    $region59: #{grounding_forward.1} parent=1 // pred_check_branch
      %112 = sbr.rel (0) target = $region61
    $region60: #{grounding_forward.1} parent=1 // pred_region
      %113 = dma.done [#allocation11], 1024
    $region61: #{grounding_forward.1} parent=1 // pred_fallthru
      _
    %v115 = vld [vmem:[#allocation2] sm:$0xff]
    %v116 = vld [vmem:[#allocation2 + $0x8] sm:$0xff]
    %v117 = vld [vmem:[#allocation2 + $0x10] sm:$0xff]
    %v118 = vld [vmem:[#allocation2 + $0x18] sm:$0xff]
    %v119 = vld [vmem:[#allocation2 + $0x20] sm:$0xff]
    %v120 = vld [vmem:[#allocation2 + $0x28] sm:$0xff]
    %v121 = vld [vmem:[#allocation2 + $0x30] sm:$0xff]
    %v122 = vld [vmem:[#allocation2 + $0x38] sm:$0xff]
    %v123 = vpack.c.bf16 %v119, %v115
    %v124 = vpack.c.bf16 %v120, %v116
    %v125 = vpack.c.bf16 %v121, %v117
    %v126 = vpack.c.bf16 %v122, %v118
    %v127 = vld [vmem:[#allocation4] sm:$0xff]
    %v128 = vld [vmem:[#allocation4 + $0x8] sm:$0xff]
    %v129 = vld [vmem:[#allocation4 + $0x10] sm:$0xff]
    %v130 = vld [vmem:[#allocation4 + $0x18] sm:$0xff]
    %v131 = vld [vmem:[#allocation4 + $0x20] sm:$0xff]
    %v132 = vld [vmem:[#allocation4 + $0x28] sm:$0xff]
    %v133 = vld [vmem:[#allocation4 + $0x30] sm:$0xff]
    %v134 = vld [vmem:[#allocation4 + $0x38] sm:$0xff]
    %v135 = vpack.c.bf16 %v131, %v127
    %v136 = vpack.c.bf16 %v132, %v128
    %v137 = vpack.c.bf16 %v133, %v129
    %v138 = vpack.c.bf16 %v134, %v130
    %v139 = vld [vmem:[#allocation6] sm:$0xff]
    %v140 = vld [vmem:[#allocation6 + $0x8] sm:$0xff]
    %v141 = vld [vmem:[#allocation6 + $0x10] sm:$0xff]
    %v142 = vld [vmem:[#allocation6 + $0x18] sm:$0xff]
    %v143 = vld [vmem:[#allocation6 + $0x20] sm:$0xff]
    %v144 = vld [vmem:[#allocation6 + $0x28] sm:$0xff]
    %v145 = vld [vmem:[#allocation6 + $0x30] sm:$0xff]
    %v146 = vld [vmem:[#allocation6 + $0x38] sm:$0xff]
    %v147 = vld [vmem:[#allocation6 + $0x40] sm:$0xff]
    %v148 = vld [vmem:[#allocation6 + $0x48] sm:$0xff]
    %v149 = vld [vmem:[#allocation6 + $0x50] sm:$0xff]
    %v150 = vld [vmem:[#allocation6 + $0x58] sm:$0xff]
    %v151 = vld [vmem:[#allocation6 + $0x60] sm:$0xff]
    %v152 = vld [vmem:[#allocation6 + $0x68] sm:$0xff]
    %v153 = vld [vmem:[#allocation6 + $0x70] sm:$0xff]
    %v154 = vld [vmem:[#allocation6 + $0x78] sm:$0xff]
    %v155 = vld [vmem:[#allocation6 + $0x80] sm:$0xff]
    %v156 = vld [vmem:[#allocation6 + $0x88] sm:$0xff]
    %v157 = vld [vmem:[#allocation6 + $0x90] sm:$0xff]
    %v158 = vld [vmem:[#allocation6 + $0x98] sm:$0xff]
    %v159 = vld [vmem:[#allocation6 + $0xa0] sm:$0xff]
    %v160 = vld [vmem:[#allocation6 + $0xa8] sm:$0xff]
    %v161 = vld [vmem:[#allocation6 + $0xb0] sm:$0xff]
    %v162 = vld [vmem:[#allocation6 + $0xb8] sm:$0xff]
    %v163 = vld [vmem:[#allocation6 + $0xc0] sm:$0xff]
    %v164 = vld [vmem:[#allocation6 + $0xc8] sm:$0xff]
    %v165 = vld [vmem:[#allocation6 + $0xd0] sm:$0xff]
    %v166 = vld [vmem:[#allocation6 + $0xd8] sm:$0xff]
    %v167 = vld [vmem:[#allocation6 + $0xe0] sm:$0xff]
    %v168 = vld [vmem:[#allocation6 + $0xe8] sm:$0xff]
    %v169 = vld [vmem:[#allocation6 + $0xf0] sm:$0xff]
    %v170 = vld [vmem:[#allocation6 + $0xf8] sm:$0xff]
    %v171 = vld [vmem:[#allocation6 + $0x100] sm:$0xff]
    %v172 = vld [vmem:[#allocation6 + $0x108] sm:$0xff]
    %v173 = vld [vmem:[#allocation6 + $0x110] sm:$0xff]
    %v174 = vld [vmem:[#allocation6 + $0x118] sm:$0xff]
    %v175 = vld [vmem:[#allocation6 + $0x120] sm:$0xff]
    %v176 = vld [vmem:[#allocation6 + $0x128] sm:$0xff]
    %v177 = vld [vmem:[#allocation6 + $0x130] sm:$0xff]
    %v178 = vld [vmem:[#allocation6 + $0x138] sm:$0xff]
    %v179 = vld [vmem:[#allocation6 + $0x140] sm:$0xff]
    %v180 = vld [vmem:[#allocation6 + $0x148] sm:$0xff]
    %v181 = vld [vmem:[#allocation6 + $0x150] sm:$0xff]
    %v182 = vld [vmem:[#allocation6 + $0x158] sm:$0xff]
    %v183 = vld [vmem:[#allocation6 + $0x160] sm:$0xff]
    %v184 = vld [vmem:[#allocation6 + $0x168] sm:$0xff]
    %v185 = vld [vmem:[#allocation6 + $0x170] sm:$0xff]
    %v186 = vld [vmem:[#allocation6 + $0x178] sm:$0xff]
    %v187 = vld [vmem:[#allocation6 + $0x180] sm:$0xff]
    %v188 = vld [vmem:[#allocation6 + $0x188] sm:$0xff]
    %v189 = vld [vmem:[#allocation6 + $0x190] sm:$0xff]
    %v190 = vld [vmem:[#allocation6 + $0x198] sm:$0xff]
    %v191 = vld [vmem:[#allocation6 + $0x1a0] sm:$0xff]
    %v192 = vld [vmem:[#allocation6 + $0x1a8] sm:$0xff]
    %v193 = vld [vmem:[#allocation6 + $0x1b0] sm:$0xff]
    %v194 = vld [vmem:[#allocation6 + $0x1b8] sm:$0xff]
    %v195 = vld [vmem:[#allocation6 + $0x1c0] sm:$0xff]
    %v196 = vld [vmem:[#allocation6 + $0x1c8] sm:$0xff]
    %v197 = vld [vmem:[#allocation6 + $0x1d0] sm:$0xff]
    %v198 = vld [vmem:[#allocation6 + $0x1d8] sm:$0xff]
    %v199 = vld [vmem:[#allocation6 + $0x1e0] sm:$0xff]
    %v200 = vld [vmem:[#allocation6 + $0x1e8] sm:$0xff]
    %v201 = vld [vmem:[#allocation6 + $0x1f0] sm:$0xff]
    %v202 = vld [vmem:[#allocation6 + $0x1f8] sm:$0xff]
    %v203 = vld [vmem:[#allocation6 + $0x200] sm:$0xff]
    %v204 = vld [vmem:[#allocation6 + $0x208] sm:$0xff]
    %v205 = vld [vmem:[#allocation6 + $0x210] sm:$0xff]
    %v206 = vld [vmem:[#allocation6 + $0x218] sm:$0xff]
    %v207 = vld [vmem:[#allocation6 + $0x220] sm:$0xff]
    %v208 = vld [vmem:[#allocation6 + $0x228] sm:$0xff]
    %v209 = vld [vmem:[#allocation6 + $0x230] sm:$0xff]
    %v210 = vld [vmem:[#allocation6 + $0x238] sm:$0xff]
    %v211 = vld [vmem:[#allocation6 + $0x240] sm:$0xff]
    %v212 = vld [vmem:[#allocation6 + $0x248] sm:$0xff]
    %v213 = vld [vmem:[#allocation6 + $0x250] sm:$0xff]
    %v214 = vld [vmem:[#allocation6 + $0x258] sm:$0xff]
    %v215 = vld [vmem:[#allocation6 + $0x260] sm:$0xff]
    %v216 = vld [vmem:[#allocation6 + $0x268] sm:$0xff]
    %v217 = vld [vmem:[#allocation6 + $0x270] sm:$0xff]
    %v218 = vld [vmem:[#allocation6 + $0x278] sm:$0xff]
    %v219 = vld [vmem:[#allocation6 + $0x280] sm:$0xff]
    %v220 = vld [vmem:[#allocation6 + $0x288] sm:$0xff]
    %v221 = vld [vmem:[#allocation6 + $0x290] sm:$0xff]
    %v222 = vld [vmem:[#allocation6 + $0x298] sm:$0xff]
    %v223 = vld [vmem:[#allocation6 + $0x2a0] sm:$0xff]
    %v224 = vld [vmem:[#allocation6 + $0x2a8] sm:$0xff]
    %v225 = vld [vmem:[#allocation6 + $0x2b0] sm:$0xff]
    %v226 = vld [vmem:[#allocation6 + $0x2b8] sm:$0xff]
    %v227 = vld [vmem:[#allocation6 + $0x2c0] sm:$0xff]
    %v228 = vld [vmem:[#allocation6 + $0x2c8] sm:$0xff]
    %v229 = vld [vmem:[#allocation6 + $0x2d0] sm:$0xff]
    %v230 = vld [vmem:[#allocation6 + $0x2d8] sm:$0xff]
    %v231 = vld [vmem:[#allocation6 + $0x2e0] sm:$0xff]
    %v232 = vld [vmem:[#allocation6 + $0x2e8] sm:$0xff]
    %v233 = vld [vmem:[#allocation6 + $0x2f0] sm:$0xff]
    %v234 = vld [vmem:[#allocation6 + $0x2f8] sm:$0xff]
    %v235 = vld [vmem:[#allocation6 + $0x300] sm:$0xff]
    %v236 = vld [vmem:[#allocation6 + $0x308] sm:$0xff]
    %v237 = vld [vmem:[#allocation6 + $0x310] sm:$0xff]
    %v238 = vld [vmem:[#allocation6 + $0x318] sm:$0xff]
    %v239 = vld [vmem:[#allocation6 + $0x320] sm:$0xff]
    %v240 = vld [vmem:[#allocation6 + $0x328] sm:$0xff]
    %v241 = vld [vmem:[#allocation6 + $0x330] sm:$0xff]
    %v242 = vld [vmem:[#allocation6 + $0x338] sm:$0xff]
    %v243 = vld [vmem:[#allocation6 + $0x340] sm:$0xff]
    %v244 = vld [vmem:[#allocation6 + $0x348] sm:$0xff]
    %v245 = vld [vmem:[#allocation6 + $0x350] sm:$0xff]
    %v246 = vld [vmem:[#allocation6 + $0x358] sm:$0xff]
    %v247 = vld [vmem:[#allocation6 + $0x360] sm:$0xff]
    %v248 = vld [vmem:[#allocation6 + $0x368] sm:$0xff]
    %v249 = vld [vmem:[#allocation6 + $0x370] sm:$0xff]
    %v250 = vld [vmem:[#allocation6 + $0x378] sm:$0xff]
    %v251 = vld [vmem:[#allocation6 + $0x380] sm:$0xff]
    %v252 = vld [vmem:[#allocation6 + $0x388] sm:$0xff]
    %v253 = vld [vmem:[#allocation6 + $0x390] sm:$0xff]
    %v254 = vld [vmem:[#allocation6 + $0x398] sm:$0xff]
    %v255 = vld [vmem:[#allocation6 + $0x3a0] sm:$0xff]
    %v256 = vld [vmem:[#allocation6 + $0x3a8] sm:$0xff]
    %v257 = vld [vmem:[#allocation6 + $0x3b0] sm:$0xff]
    %v258 = vld [vmem:[#allocation6 + $0x3b8] sm:$0xff]
    %v259 = vld [vmem:[#allocation6 + $0x3c0] sm:$0xff]
    %v260 = vld [vmem:[#allocation6 + $0x3c8] sm:$0xff]
    %v261 = vld [vmem:[#allocation6 + $0x3d0] sm:$0xff]
    %v262 = vld [vmem:[#allocation6 + $0x3d8] sm:$0xff]
    %v263 = vld [vmem:[#allocation6 + $0x3e0] sm:$0xff]
    %v264 = vld [vmem:[#allocation6 + $0x3e8] sm:$0xff]
    %v265 = vld [vmem:[#allocation6 + $0x3f0] sm:$0xff]
    %v266 = vld [vmem:[#allocation6 + $0x3f8] sm:$0xff]
    %v267 = vld [vmem:[#allocation7] sm:$0xff]
    %v268 = vld [vmem:[#allocation7 + $0x8] sm:$0xff]
    %v269 = vld [vmem:[#allocation7 + $0x10] sm:$0xff]
    %v270 = vld [vmem:[#allocation7 + $0x18] sm:$0xff]
    %v271 = vld [vmem:[#allocation7 + $0x20] sm:$0xff]
    %v272 = vld [vmem:[#allocation7 + $0x28] sm:$0xff]
    %v273 = vld [vmem:[#allocation7 + $0x30] sm:$0xff]
    %v274 = vld [vmem:[#allocation7 + $0x38] sm:$0xff]
    %v275 = vld [vmem:[#allocation7 + $0x40] sm:$0xff]
    %v276 = vld [vmem:[#allocation7 + $0x48] sm:$0xff]
    %v277 = vld [vmem:[#allocation7 + $0x50] sm:$0xff]
    %v278 = vld [vmem:[#allocation7 + $0x58] sm:$0xff]
    %v279 = vld [vmem:[#allocation7 + $0x60] sm:$0xff]
    %v280 = vld [vmem:[#allocation7 + $0x68] sm:$0xff]
    %v281 = vld [vmem:[#allocation7 + $0x70] sm:$0xff]
    %v282 = vld [vmem:[#allocation7 + $0x78] sm:$0xff]
    %v283 = vld [vmem:[#allocation7 + $0x80] sm:$0xff]
    %v284 = vld [vmem:[#allocation7 + $0x88] sm:$0xff]
    %v285 = vld [vmem:[#allocation7 + $0x90] sm:$0xff]
    %v286 = vld [vmem:[#allocation7 + $0x98] sm:$0xff]
    %v287 = vld [vmem:[#allocation7 + $0xa0] sm:$0xff]
    %v288 = vld [vmem:[#allocation7 + $0xa8] sm:$0xff]
    %v289 = vld [vmem:[#allocation7 + $0xb0] sm:$0xff]
    %v290 = vld [vmem:[#allocation7 + $0xb8] sm:$0xff]
    %v291 = vld [vmem:[#allocation7 + $0xc0] sm:$0xff]
    %v292 = vld [vmem:[#allocation7 + $0xc8] sm:$0xff]
    %v293 = vld [vmem:[#allocation7 + $0xd0] sm:$0xff]
    %v294 = vld [vmem:[#allocation7 + $0xd8] sm:$0xff]
    %v295 = vld [vmem:[#allocation7 + $0xe0] sm:$0xff]
    %v296 = vld [vmem:[#allocation7 + $0xe8] sm:$0xff]
    %v297 = vld [vmem:[#allocation7 + $0xf0] sm:$0xff]
    %v298 = vld [vmem:[#allocation7 + $0xf8] sm:$0xff]
    %v299 = vld [vmem:[#allocation7 + $0x100] sm:$0xff]
    %v300 = vld [vmem:[#allocation7 + $0x108] sm:$0xff]
    %v301 = vld [vmem:[#allocation7 + $0x110] sm:$0xff]
    %v302 = vld [vmem:[#allocation7 + $0x118] sm:$0xff]
    %v303 = vld [vmem:[#allocation7 + $0x120] sm:$0xff]
    %v304 = vld [vmem:[#allocation7 + $0x128] sm:$0xff]
    %v305 = vld [vmem:[#allocation7 + $0x130] sm:$0xff]
    %v306 = vld [vmem:[#allocation7 + $0x138] sm:$0xff]
    %v307 = vld [vmem:[#allocation7 + $0x140] sm:$0xff]
    %v308 = vld [vmem:[#allocation7 + $0x148] sm:$0xff]
    %v309 = vld [vmem:[#allocation7 + $0x150] sm:$0xff]
    %v310 = vld [vmem:[#allocation7 + $0x158] sm:$0xff]
    %v311 = vld [vmem:[#allocation7 + $0x160] sm:$0xff]
    %v312 = vld [vmem:[#allocation7 + $0x168] sm:$0xff]
    %v313 = vld [vmem:[#allocation7 + $0x170] sm:$0xff]
    %v314 = vld [vmem:[#allocation7 + $0x178] sm:$0xff]
    %v315 = vld [vmem:[#allocation7 + $0x180] sm:$0xff]
    %v316 = vld [vmem:[#allocation7 + $0x188] sm:$0xff]
    %v317 = vld [vmem:[#allocation7 + $0x190] sm:$0xff]
    %v318 = vld [vmem:[#allocation7 + $0x198] sm:$0xff]
    %v319 = vld [vmem:[#allocation7 + $0x1a0] sm:$0xff]
    %v320 = vld [vmem:[#allocation7 + $0x1a8] sm:$0xff]
    %v321 = vld [vmem:[#allocation7 + $0x1b0] sm:$0xff]
    %v322 = vld [vmem:[#allocation7 + $0x1b8] sm:$0xff]
    %v323 = vld [vmem:[#allocation7 + $0x1c0] sm:$0xff]
    %v324 = vld [vmem:[#allocation7 + $0x1c8] sm:$0xff]
    %v325 = vld [vmem:[#allocation7 + $0x1d0] sm:$0xff]
    %v326 = vld [vmem:[#allocation7 + $0x1d8] sm:$0xff]
    %v327 = vld [vmem:[#allocation7 + $0x1e0] sm:$0xff]
    %v328 = vld [vmem:[#allocation7 + $0x1e8] sm:$0xff]
    %v329 = vld [vmem:[#allocation7 + $0x1f0] sm:$0xff]
    %v330 = vld [vmem:[#allocation7 + $0x1f8] sm:$0xff]
    %v331 = vld [vmem:[#allocation7 + $0x200] sm:$0xff]
    %v332 = vld [vmem:[#allocation7 + $0x208] sm:$0xff]
    %v333 = vld [vmem:[#allocation7 + $0x210] sm:$0xff]
    %v334 = vld [vmem:[#allocation7 + $0x218] sm:$0xff]
    %v335 = vld [vmem:[#allocation7 + $0x220] sm:$0xff]
    %v336 = vld [vmem:[#allocation7 + $0x228] sm:$0xff]
    %v337 = vld [vmem:[#allocation7 + $0x230] sm:$0xff]
    %v338 = vld [vmem:[#allocation7 + $0x238] sm:$0xff]
    %v339 = vld [vmem:[#allocation7 + $0x240] sm:$0xff]
    %v340 = vld [vmem:[#allocation7 + $0x248] sm:$0xff]
    %v341 = vld [vmem:[#allocation7 + $0x250] sm:$0xff]
    %v342 = vld [vmem:[#allocation7 + $0x258] sm:$0xff]
    %v343 = vld [vmem:[#allocation7 + $0x260] sm:$0xff]
    %v344 = vld [vmem:[#allocation7 + $0x268] sm:$0xff]
    %v345 = vld [vmem:[#allocation7 + $0x270] sm:$0xff]
    %v346 = vld [vmem:[#allocation7 + $0x278] sm:$0xff]
    %v347 = vld [vmem:[#allocation7 + $0x280] sm:$0xff]
    %v348 = vld [vmem:[#allocation7 + $0x288] sm:$0xff]
    %v349 = vld [vmem:[#allocation7 + $0x290] sm:$0xff]
    %v350 = vld [vmem:[#allocation7 + $0x298] sm:$0xff]
    %v351 = vld [vmem:[#allocation7 + $0x2a0] sm:$0xff]
    %v352 = vld [vmem:[#allocation7 + $0x2a8] sm:$0xff]
    %v353 = vld [vmem:[#allocation7 + $0x2b0] sm:$0xff]
    %v354 = vld [vmem:[#allocation7 + $0x2b8] sm:$0xff]
    %v355 = vld [vmem:[#allocation7 + $0x2c0] sm:$0xff]
    %v356 = vld [vmem:[#allocation7 + $0x2c8] sm:$0xff]
    %v357 = vld [vmem:[#allocation7 + $0x2d0] sm:$0xff]
    %v358 = vld [vmem:[#allocation7 + $0x2d8] sm:$0xff]
    %v359 = vld [vmem:[#allocation7 + $0x2e0] sm:$0xff]
    %v360 = vld [vmem:[#allocation7 + $0x2e8] sm:$0xff]
    %v361 = vld [vmem:[#allocation7 + $0x2f0] sm:$0xff]
    %v362 = vld [vmem:[#allocation7 + $0x2f8] sm:$0xff]
    %v363 = vld [vmem:[#allocation7 + $0x300] sm:$0xff]
    %v364 = vld [vmem:[#allocation7 + $0x308] sm:$0xff]
    %v365 = vld [vmem:[#allocation7 + $0x310] sm:$0xff]
    %v366 = vld [vmem:[#allocation7 + $0x318] sm:$0xff]
    %v367 = vld [vmem:[#allocation7 + $0x320] sm:$0xff]
    %v368 = vld [vmem:[#allocation7 + $0x328] sm:$0xff]
    %v369 = vld [vmem:[#allocation7 + $0x330] sm:$0xff]
    %v370 = vld [vmem:[#allocation7 + $0x338] sm:$0xff]
    %v371 = vld [vmem:[#allocation7 + $0x340] sm:$0xff]
    %v372 = vld [vmem:[#allocation7 + $0x348] sm:$0xff]
    %v373 = vld [vmem:[#allocation7 + $0x350] sm:$0xff]
    %v374 = vld [vmem:[#allocation7 + $0x358] sm:$0xff]
    %v375 = vld [vmem:[#allocation7 + $0x360] sm:$0xff]
    %v376 = vld [vmem:[#allocation7 + $0x368] sm:$0xff]
    %v377 = vld [vmem:[#allocation7 + $0x370] sm:$0xff]
    %v378 = vld [vmem:[#allocation7 + $0x378] sm:$0xff]
    %v379 = vld [vmem:[#allocation7 + $0x380] sm:$0xff]
    %v380 = vld [vmem:[#allocation7 + $0x388] sm:$0xff]
    %v381 = vld [vmem:[#allocation7 + $0x390] sm:$0xff]
    %v382 = vld [vmem:[#allocation7 + $0x398] sm:$0xff]
    %v383 = vld [vmem:[#allocation7 + $0x3a0] sm:$0xff]
    %v384 = vld [vmem:[#allocation7 + $0x3a8] sm:$0xff]
    %v385 = vld [vmem:[#allocation7 + $0x3b0] sm:$0xff]
    %v386 = vld [vmem:[#allocation7 + $0x3b8] sm:$0xff]
    %v387 = vld [vmem:[#allocation7 + $0x3c0] sm:$0xff]
    %v388 = vld [vmem:[#allocation7 + $0x3c8] sm:$0xff]
    %v389 = vld [vmem:[#allocation7 + $0x3d0] sm:$0xff]
    %v390 = vld [vmem:[#allocation7 + $0x3d8] sm:$0xff]
    %v391 = vld [vmem:[#allocation7 + $0x3e0] sm:$0xff]
    %v392 = vld [vmem:[#allocation7 + $0x3e8] sm:$0xff]
    %v393 = vld [vmem:[#allocation7 + $0x3f0] sm:$0xff]
    %v394 = vld [vmem:[#allocation7 + $0x3f8] sm:$0xff]
    %v523 = vunpack.c.l.b16 %v267
    %v524 = vunpack.c.h.b16 %v267
    %v525 = vunpack.c.l.b16 %v268
    %v526 = vunpack.c.h.b16 %v268
    %v527 = vunpack.c.l.b16 %v269
    %v528 = vunpack.c.h.b16 %v269
    %v529 = vunpack.c.l.b16 %v270
    %v530 = vunpack.c.h.b16 %v270
    %v531 = vunpack.c.l.b16 %v271
    %v532 = vunpack.c.h.b16 %v271
    %v533 = vunpack.c.l.b16 %v272
    %v534 = vunpack.c.h.b16 %v272
    %v535 = vunpack.c.l.b16 %v273
    %v536 = vunpack.c.h.b16 %v273
    %v537 = vunpack.c.l.b16 %v274
    %v538 = vunpack.c.h.b16 %v274
    %v539 = vunpack.c.l.b16 %v275
    %v540 = vunpack.c.h.b16 %v275
    %v541 = vunpack.c.l.b16 %v276
    %v542 = vunpack.c.h.b16 %v276
    %v543 = vunpack.c.l.b16 %v277
    %v544 = vunpack.c.h.b16 %v277
    %v545 = vunpack.c.l.b16 %v278
    %v546 = vunpack.c.h.b16 %v278
    %v547 = vunpack.c.l.b16 %v279
    %v548 = vunpack.c.h.b16 %v279
    %v549 = vunpack.c.l.b16 %v280
    %v550 = vunpack.c.h.b16 %v280
    %v551 = vunpack.c.l.b16 %v281
    %v552 = vunpack.c.h.b16 %v281
    %v553 = vunpack.c.l.b16 %v282
    %v554 = vunpack.c.h.b16 %v282
    %v555 = vunpack.c.l.b16 %v283
    %v556 = vunpack.c.h.b16 %v283
    %v557 = vunpack.c.l.b16 %v284
    %v558 = vunpack.c.h.b16 %v284
    %v559 = vunpack.c.l.b16 %v285
    %v560 = vunpack.c.h.b16 %v285
    %v561 = vunpack.c.l.b16 %v286
    %v562 = vunpack.c.h.b16 %v286
    %v563 = vunpack.c.l.b16 %v287
    %v564 = vunpack.c.h.b16 %v287
    %v565 = vunpack.c.l.b16 %v288
    %v566 = vunpack.c.h.b16 %v288
    %v567 = vunpack.c.l.b16 %v289
    %v568 = vunpack.c.h.b16 %v289
    %v569 = vunpack.c.l.b16 %v290
    %v570 = vunpack.c.h.b16 %v290
    %v571 = vunpack.c.l.b16 %v291
    %v572 = vunpack.c.h.b16 %v291
    %v573 = vunpack.c.l.b16 %v292
    %v574 = vunpack.c.h.b16 %v292
    %v575 = vunpack.c.l.b16 %v293
    %v576 = vunpack.c.h.b16 %v293
    %v577 = vunpack.c.l.b16 %v294
    %v578 = vunpack.c.h.b16 %v294
    %v579 = vunpack.c.l.b16 %v295
    %v580 = vunpack.c.h.b16 %v295
    %v581 = vunpack.c.l.b16 %v296
    %v582 = vunpack.c.h.b16 %v296
    %v583 = vunpack.c.l.b16 %v297
    %v584 = vunpack.c.h.b16 %v297
    %v585 = vunpack.c.l.b16 %v298
    %v586 = vunpack.c.h.b16 %v298
    %v587 = vunpack.c.l.b16 %v299
    %v588 = vunpack.c.h.b16 %v299
    %v589 = vunpack.c.l.b16 %v300
    %v590 = vunpack.c.h.b16 %v300
    %v591 = vunpack.c.l.b16 %v301
    %v592 = vunpack.c.h.b16 %v301
    %v593 = vunpack.c.l.b16 %v302
    %v594 = vunpack.c.h.b16 %v302
    %v595 = vunpack.c.l.b16 %v303
    %v596 = vunpack.c.h.b16 %v303
    %v597 = vunpack.c.l.b16 %v304
    %v598 = vunpack.c.h.b16 %v304
    %v599 = vunpack.c.l.b16 %v305
    %v600 = vunpack.c.h.b16 %v305
    %v601 = vunpack.c.l.b16 %v306
    %v602 = vunpack.c.h.b16 %v306
    %v603 = vunpack.c.l.b16 %v307
    %v604 = vunpack.c.h.b16 %v307
    %v605 = vunpack.c.l.b16 %v308
    %v606 = vunpack.c.h.b16 %v308
    %v607 = vunpack.c.l.b16 %v309
    %v608 = vunpack.c.h.b16 %v309
    %v609 = vunpack.c.l.b16 %v310
    %v610 = vunpack.c.h.b16 %v310
    %v611 = vunpack.c.l.b16 %v311
    %v612 = vunpack.c.h.b16 %v311
    %v613 = vunpack.c.l.b16 %v312
    %v614 = vunpack.c.h.b16 %v312
    %v615 = vunpack.c.l.b16 %v313
    %v616 = vunpack.c.h.b16 %v313
    %v617 = vunpack.c.l.b16 %v314
    %v618 = vunpack.c.h.b16 %v314
    %v619 = vunpack.c.l.b16 %v315
    %v620 = vunpack.c.h.b16 %v315
    %v621 = vunpack.c.l.b16 %v316
    %v622 = vunpack.c.h.b16 %v316
    %v623 = vunpack.c.l.b16 %v317
    %v624 = vunpack.c.h.b16 %v317
    %v625 = vunpack.c.l.b16 %v318
    %v626 = vunpack.c.h.b16 %v318
    %v627 = vunpack.c.l.b16 %v319
    %v628 = vunpack.c.h.b16 %v319
    %v629 = vunpack.c.l.b16 %v320
    %v630 = vunpack.c.h.b16 %v320
    %v631 = vunpack.c.l.b16 %v321
    %v632 = vunpack.c.h.b16 %v321
    %v633 = vunpack.c.l.b16 %v322
    %v634 = vunpack.c.h.b16 %v322
    %v635 = vunpack.c.l.b16 %v323
    %v636 = vunpack.c.h.b16 %v323
    %v637 = vunpack.c.l.b16 %v324
    %v638 = vunpack.c.h.b16 %v324
    %v639 = vunpack.c.l.b16 %v325
    %v640 = vunpack.c.h.b16 %v325
    %v641 = vunpack.c.l.b16 %v326
    %v642 = vunpack.c.h.b16 %v326
    %v643 = vunpack.c.l.b16 %v327
    %v644 = vunpack.c.h.b16 %v327
    %v645 = vunpack.c.l.b16 %v328
    %v646 = vunpack.c.h.b16 %v328
    %v647 = vunpack.c.l.b16 %v329
    %v648 = vunpack.c.h.b16 %v329
    %v649 = vunpack.c.l.b16 %v330
    %v650 = vunpack.c.h.b16 %v330
    %v651 = vunpack.c.l.b16 %v331
    %v652 = vunpack.c.h.b16 %v331
    %v653 = vunpack.c.l.b16 %v332
    %v654 = vunpack.c.h.b16 %v332
    %v655 = vunpack.c.l.b16 %v333
    %v656 = vunpack.c.h.b16 %v333
    %v657 = vunpack.c.l.b16 %v334
    %v658 = vunpack.c.h.b16 %v334
    %v659 = vunpack.c.l.b16 %v335
    %v660 = vunpack.c.h.b16 %v335
    %v661 = vunpack.c.l.b16 %v336
    %v662 = vunpack.c.h.b16 %v336
    %v663 = vunpack.c.l.b16 %v337
    %v664 = vunpack.c.h.b16 %v337
    %v665 = vunpack.c.l.b16 %v338
    %v666 = vunpack.c.h.b16 %v338
    %v667 = vunpack.c.l.b16 %v339
    %v668 = vunpack.c.h.b16 %v339
    %v669 = vunpack.c.l.b16 %v340
    %v670 = vunpack.c.h.b16 %v340
    %v671 = vunpack.c.l.b16 %v341
    %v672 = vunpack.c.h.b16 %v341
    %v673 = vunpack.c.l.b16 %v342
    %v674 = vunpack.c.h.b16 %v342
    %v675 = vunpack.c.l.b16 %v343
    %v676 = vunpack.c.h.b16 %v343
    %v677 = vunpack.c.l.b16 %v344
    %v678 = vunpack.c.h.b16 %v344
    %v679 = vunpack.c.l.b16 %v345
    %v680 = vunpack.c.h.b16 %v345
    %v681 = vunpack.c.l.b16 %v346
    %v682 = vunpack.c.h.b16 %v346
    %v683 = vunpack.c.l.b16 %v347
    %v684 = vunpack.c.h.b16 %v347
    %v685 = vunpack.c.l.b16 %v348
    %v686 = vunpack.c.h.b16 %v348
    %v687 = vunpack.c.l.b16 %v349
    %v688 = vunpack.c.h.b16 %v349
    %v689 = vunpack.c.l.b16 %v350
    %v690 = vunpack.c.h.b16 %v350
    %v691 = vunpack.c.l.b16 %v351
    %v692 = vunpack.c.h.b16 %v351
    %v693 = vunpack.c.l.b16 %v352
    %v694 = vunpack.c.h.b16 %v352
    %v695 = vunpack.c.l.b16 %v353
    %v696 = vunpack.c.h.b16 %v353
    %v697 = vunpack.c.l.b16 %v354
    %v698 = vunpack.c.h.b16 %v354
    %v699 = vunpack.c.l.b16 %v355
    %v700 = vunpack.c.h.b16 %v355
    %v701 = vunpack.c.l.b16 %v356
    %v702 = vunpack.c.h.b16 %v356
    %v703 = vunpack.c.l.b16 %v357
    %v704 = vunpack.c.h.b16 %v357
    %v705 = vunpack.c.l.b16 %v358
    %v706 = vunpack.c.h.b16 %v358
    %v707 = vunpack.c.l.b16 %v359
    %v708 = vunpack.c.h.b16 %v359
    %v709 = vunpack.c.l.b16 %v360
    %v710 = vunpack.c.h.b16 %v360
    %v711 = vunpack.c.l.b16 %v361
    %v712 = vunpack.c.h.b16 %v361
    %v713 = vunpack.c.l.b16 %v362
    %v714 = vunpack.c.h.b16 %v362
    %v715 = vunpack.c.l.b16 %v363
    %v716 = vunpack.c.h.b16 %v363
    %v717 = vunpack.c.l.b16 %v364
    %v718 = vunpack.c.h.b16 %v364
    %v719 = vunpack.c.l.b16 %v365
    %v720 = vunpack.c.h.b16 %v365
    %v721 = vunpack.c.l.b16 %v366
    %v722 = vunpack.c.h.b16 %v366
    %v723 = vunpack.c.l.b16 %v367
    %v724 = vunpack.c.h.b16 %v367
    %v725 = vunpack.c.l.b16 %v368
    %v726 = vunpack.c.h.b16 %v368
    %v727 = vunpack.c.l.b16 %v369
    %v728 = vunpack.c.h.b16 %v369
    %v729 = vunpack.c.l.b16 %v370
    %v730 = vunpack.c.h.b16 %v370
    %v731 = vunpack.c.l.b16 %v371
    %v732 = vunpack.c.h.b16 %v371
    %v733 = vunpack.c.l.b16 %v372
    %v734 = vunpack.c.h.b16 %v372
    %v735 = vunpack.c.l.b16 %v373
    %v736 = vunpack.c.h.b16 %v373
    %v737 = vunpack.c.l.b16 %v374
    %v738 = vunpack.c.h.b16 %v374
    %v739 = vunpack.c.l.b16 %v375
    %v740 = vunpack.c.h.b16 %v375
    %v741 = vunpack.c.l.b16 %v376
    %v742 = vunpack.c.h.b16 %v376
    %v743 = vunpack.c.l.b16 %v377
    %v744 = vunpack.c.h.b16 %v377
    %v745 = vunpack.c.l.b16 %v378
    %v746 = vunpack.c.h.b16 %v378
    %v747 = vunpack.c.l.b16 %v379
    %v748 = vunpack.c.h.b16 %v379
    %v749 = vunpack.c.l.b16 %v380
    %v750 = vunpack.c.h.b16 %v380
    %v751 = vunpack.c.l.b16 %v381
    %v752 = vunpack.c.h.b16 %v381
    %v753 = vunpack.c.l.b16 %v382
    %v754 = vunpack.c.h.b16 %v382
    %v755 = vunpack.c.l.b16 %v383
    %v756 = vunpack.c.h.b16 %v383
    %v757 = vunpack.c.l.b16 %v384
    %v758 = vunpack.c.h.b16 %v384
    %v759 = vunpack.c.l.b16 %v385
    %v760 = vunpack.c.h.b16 %v385
    %v761 = vunpack.c.l.b16 %v386
    %v762 = vunpack.c.h.b16 %v386
    %v763 = vunpack.c.l.b16 %v387
    %v764 = vunpack.c.h.b16 %v387
    %v765 = vunpack.c.l.b16 %v388
    %v766 = vunpack.c.h.b16 %v388
    %v767 = vunpack.c.l.b16 %v389
    %v768 = vunpack.c.h.b16 %v389
    %v769 = vunpack.c.l.b16 %v390
    %v770 = vunpack.c.h.b16 %v390
    %v771 = vunpack.c.l.b16 %v391
    %v772 = vunpack.c.h.b16 %v391
    %v773 = vunpack.c.l.b16 %v392
    %v774 = vunpack.c.h.b16 %v392
    %v775 = vunpack.c.l.b16 %v393
    %v776 = vunpack.c.h.b16 %v393
    %v777 = vunpack.c.l.b16 %v394
    %v778 = vunpack.c.h.b16 %v394
    %v779 = vpack.c.b16 %v527, %v523
    %v780 = vpack.c.b16 %v528, %v524
    %v781 = vpack.c.b16 %v529, %v525
    %v782 = vpack.c.b16 %v530, %v526
    %v783 = vpack.c.b16 %v535, %v531
    %v784 = vpack.c.b16 %v536, %v532
    %v785 = vpack.c.b16 %v537, %v533
    %v786 = vpack.c.b16 %v538, %v534
    %v787 = vpack.c.b16 %v543, %v539
    %v788 = vpack.c.b16 %v544, %v540
    %v789 = vpack.c.b16 %v545, %v541
    %v790 = vpack.c.b16 %v546, %v542
    %v791 = vpack.c.b16 %v551, %v547
    %v792 = vpack.c.b16 %v552, %v548
    %v793 = vpack.c.b16 %v553, %v549
    %v794 = vpack.c.b16 %v554, %v550
    %v795 = vpack.c.b16 %v559, %v555
    %v796 = vpack.c.b16 %v560, %v556
    %v797 = vpack.c.b16 %v561, %v557
    %v798 = vpack.c.b16 %v562, %v558
    %v799 = vpack.c.b16 %v567, %v563
    %v800 = vpack.c.b16 %v568, %v564
    %v801 = vpack.c.b16 %v569, %v565
    %v802 = vpack.c.b16 %v570, %v566
    %v803 = vpack.c.b16 %v575, %v571
    %v804 = vpack.c.b16 %v576, %v572
    %v805 = vpack.c.b16 %v577, %v573
    %v806 = vpack.c.b16 %v578, %v574
    %v807 = vpack.c.b16 %v583, %v579
    %v808 = vpack.c.b16 %v584, %v580
    %v809 = vpack.c.b16 %v585, %v581
    %v810 = vpack.c.b16 %v586, %v582
    %v811 = vpack.c.b16 %v591, %v587
    %v812 = vpack.c.b16 %v592, %v588
    %v813 = vpack.c.b16 %v593, %v589
    %v814 = vpack.c.b16 %v594, %v590
    %v815 = vpack.c.b16 %v599, %v595
    %v816 = vpack.c.b16 %v600, %v596
    %v817 = vpack.c.b16 %v601, %v597
    %v818 = vpack.c.b16 %v602, %v598
    %v819 = vpack.c.b16 %v607, %v603
    %v820 = vpack.c.b16 %v608, %v604
    %v821 = vpack.c.b16 %v609, %v605
    %v822 = vpack.c.b16 %v610, %v606
    %v823 = vpack.c.b16 %v615, %v611
    %v824 = vpack.c.b16 %v616, %v612
    %v825 = vpack.c.b16 %v617, %v613
    %v826 = vpack.c.b16 %v618, %v614
    %v827 = vpack.c.b16 %v623, %v619
    %v828 = vpack.c.b16 %v624, %v620
    %v829 = vpack.c.b16 %v625, %v621
    %v830 = vpack.c.b16 %v626, %v622
    %v831 = vpack.c.b16 %v631, %v627
    %v832 = vpack.c.b16 %v632, %v628
    %v833 = vpack.c.b16 %v633, %v629
    %v834 = vpack.c.b16 %v634, %v630
    %v835 = vpack.c.b16 %v639, %v635
    %v836 = vpack.c.b16 %v640, %v636
    %v837 = vpack.c.b16 %v641, %v637
    %v838 = vpack.c.b16 %v642, %v638
    %v839 = vpack.c.b16 %v647, %v643
    %v840 = vpack.c.b16 %v648, %v644
    %v841 = vpack.c.b16 %v649, %v645
    %v842 = vpack.c.b16 %v650, %v646
    %v843 = vpack.c.b16 %v655, %v651
    %v844 = vpack.c.b16 %v656, %v652
    %v845 = vpack.c.b16 %v657, %v653
    %v846 = vpack.c.b16 %v658, %v654
    %v847 = vpack.c.b16 %v663, %v659
    %v848 = vpack.c.b16 %v664, %v660
    %v849 = vpack.c.b16 %v665, %v661
    %v850 = vpack.c.b16 %v666, %v662
    %v851 = vpack.c.b16 %v671, %v667
    %v852 = vpack.c.b16 %v672, %v668
    %v853 = vpack.c.b16 %v673, %v669
    %v854 = vpack.c.b16 %v674, %v670
    %v855 = vpack.c.b16 %v679, %v675
    %v856 = vpack.c.b16 %v680, %v676
    %v857 = vpack.c.b16 %v681, %v677
    %v858 = vpack.c.b16 %v682, %v678
    %v859 = vpack.c.b16 %v687, %v683
    %v860 = vpack.c.b16 %v688, %v684
    %v861 = vpack.c.b16 %v689, %v685
    %v862 = vpack.c.b16 %v690, %v686
    %v863 = vpack.c.b16 %v695, %v691
    %v864 = vpack.c.b16 %v696, %v692
    %v865 = vpack.c.b16 %v697, %v693
    %v866 = vpack.c.b16 %v698, %v694
    %v867 = vpack.c.b16 %v703, %v699
    %v868 = vpack.c.b16 %v704, %v700
    %v869 = vpack.c.b16 %v705, %v701
    %v870 = vpack.c.b16 %v706, %v702
    %v871 = vpack.c.b16 %v711, %v707
    %v872 = vpack.c.b16 %v712, %v708
    %v873 = vpack.c.b16 %v713, %v709
    %v874 = vpack.c.b16 %v714, %v710
    %v875 = vpack.c.b16 %v719, %v715
    %v876 = vpack.c.b16 %v720, %v716
    %v877 = vpack.c.b16 %v721, %v717
    %v878 = vpack.c.b16 %v722, %v718
    %v879 = vpack.c.b16 %v727, %v723
    %v880 = vpack.c.b16 %v728, %v724
    %v881 = vpack.c.b16 %v729, %v725
    %v882 = vpack.c.b16 %v730, %v726
    %v883 = vpack.c.b16 %v735, %v731
    %v884 = vpack.c.b16 %v736, %v732
    %v885 = vpack.c.b16 %v737, %v733
    %v886 = vpack.c.b16 %v738, %v734
    %v887 = vpack.c.b16 %v743, %v739
    %v888 = vpack.c.b16 %v744, %v740
    %v889 = vpack.c.b16 %v745, %v741
    %v890 = vpack.c.b16 %v746, %v742
    %v891 = vpack.c.b16 %v751, %v747
    %v892 = vpack.c.b16 %v752, %v748
    %v893 = vpack.c.b16 %v753, %v749
    %v894 = vpack.c.b16 %v754, %v750
    %v895 = vpack.c.b16 %v759, %v755
    %v896 = vpack.c.b16 %v760, %v756
    %v897 = vpack.c.b16 %v761, %v757
    %v898 = vpack.c.b16 %v762, %v758
    %v899 = vpack.c.b16 %v767, %v763
    %v900 = vpack.c.b16 %v768, %v764
    %v901 = vpack.c.b16 %v769, %v765
    %v902 = vpack.c.b16 %v770, %v766
    %v903 = vpack.c.b16 %v775, %v771
    %v904 = vpack.c.b16 %v776, %v772
    %v905 = vpack.c.b16 %v777, %v773
    %v906 = vpack.c.b16 %v778, %v774
    %1035 = vmatprep.subr.bf16.mxu0 %v808
    %1036 = vmatpush1.bf16.msra.mxu0 %v807
    %1037 = vmatprep.subr.bf16.mxu0 %v804
    %1038 = vmatpush1.bf16.msra.mxu0 %v803
    %1039 = vmatprep.subr.bf16.mxu0 %v800
    %1040 = vmatpush1.bf16.msra.mxu0 %v799
    %1041 = vmatprep.subr.bf16.mxu0 %v796
    %1042 = vmatpush1.bf16.msra.mxu0 %v795
    %1043 = vmatprep.subr.bf16.mxu0 %v792
    %1044 = vmatpush1.bf16.msra.mxu0 %v791
    %1045 = vmatprep.subr.bf16.mxu0 %v788
    %1046 = vmatpush1.bf16.msra.mxu0 %v787
    %1047 = vmatprep.subr.bf16.mxu0 %v784
    %1048 = vmatpush1.bf16.msra.mxu0 %v783
    %1049 = vmatprep.subr.bf16.mxu0 %v780
    %1050 = vmatpush1.bf16.msra.mxu0 %v779
    %1051 = vmatprep.subr.bf16.mxu0 %v840
    %1052 = vmatpush2.bf16.msra.mxu0 %v839
    %1053 = vmatprep.subr.bf16.mxu0 %v836
    %1054 = vmatpush2.bf16.msra.mxu0 %v835
    %1055 = vmatprep.subr.bf16.mxu0 %v832
    %1056 = vmatpush2.bf16.msra.mxu0 %v831
    %1057 = vmatprep.subr.bf16.mxu0 %v828
    %1058 = vmatpush2.bf16.msra.mxu0 %v827
    %1059 = vmatprep.subr.bf16.mxu0 %v824
    %1060 = vmatpush2.bf16.msra.mxu0 %v823
    %1061 = vmatprep.subr.bf16.mxu0 %v820
    %1062 = vmatpush2.bf16.msra.mxu0 %v819
    %1063 = vmatprep.subr.bf16.mxu0 %v816
    %1064 = vmatpush2.bf16.msra.mxu0 %v815
    %1065 = vmatprep.subr.bf16.mxu0 %v812
    %1066 = vmatpush2.bf16.msra.mxu0 %v811
    %1067 = vmatprep.mubr.bf16.mxu0 %v136
    %1068 = vmatmul.mubr.bf16.gmra.mxu0 %v135
    %v1069 = vpop.f32.mrf.mxu0
    %v1070 = vadd.f32 0.0, %v1069
    %v1071 = vpop.f32.mrf.mxu0
    %v1072 = vadd.f32 0.0, %v1071
    %v1073 = vpop.f32.mrf.mxu0
    %v1074 = vadd.f32 0.0, %v1073
    %v1075 = vpop.f32.mrf.mxu0
    %v1076 = vadd.f32 0.0, %v1075
    %1077 = vdwg.mxu0
    %1078 = vmatprep.subr.bf16.mxu0 %v872
    %1079 = vmatpush1.bf16.msra.mxu0 %v871
    %1080 = vmatprep.subr.bf16.mxu0 %v868
    %1081 = vmatpush1.bf16.msra.mxu0 %v867
    %1082 = vmatprep.subr.bf16.mxu0 %v864
    %1083 = vmatpush1.bf16.msra.mxu0 %v863
    %1084 = vmatprep.subr.bf16.mxu0 %v860
    %1085 = vmatpush1.bf16.msra.mxu0 %v859
    %1086 = vmatprep.subr.bf16.mxu0 %v856
    %1087 = vmatpush1.bf16.msra.mxu0 %v855
    %1088 = vmatprep.subr.bf16.mxu0 %v852
    %1089 = vmatpush1.bf16.msra.mxu0 %v851
    %1090 = vmatprep.subr.bf16.mxu0 %v848
    %1091 = vmatpush1.bf16.msra.mxu0 %v847
    %1092 = vmatprep.subr.bf16.mxu0 %v844
    %1093 = vmatpush1.bf16.msra.mxu0 %v843
    %1094 = vmatprep.subr.bf16.mxu0 %v904
    %1095 = vmatpush2.bf16.msra.mxu0 %v903
    %1096 = vmatprep.subr.bf16.mxu0 %v900
    %1097 = vmatpush2.bf16.msra.mxu0 %v899
    %1098 = vmatprep.subr.bf16.mxu0 %v896
    %1099 = vmatpush2.bf16.msra.mxu0 %v895
    %1100 = vmatprep.subr.bf16.mxu0 %v892
    %1101 = vmatpush2.bf16.msra.mxu0 %v891
    %1102 = vmatprep.subr.bf16.mxu0 %v888
    %1103 = vmatpush2.bf16.msra.mxu0 %v887
    %1104 = vmatprep.subr.bf16.mxu0 %v884
    %1105 = vmatpush2.bf16.msra.mxu0 %v883
    %1106 = vmatprep.subr.bf16.mxu0 %v880
    %1107 = vmatpush2.bf16.msra.mxu0 %v879
    %1108 = vmatprep.subr.bf16.mxu0 %v876
    %1109 = vmatpush2.bf16.msra.mxu0 %v875
    %1110 = vmatprep.mubr.bf16.mxu0 %v138
    %1111 = vmatmul.mubr.bf16.gmra.mxu0 %v137
    %v1112 = vpop.f32.mrf.mxu0
    %v1113 = vadd.f32 %v1070, %v1112
    %v1114 = vpop.f32.mrf.mxu0
    %v1115 = vadd.f32 %v1072, %v1114
    %v1116 = vpop.f32.mrf.mxu0
    %v1117 = vadd.f32 %v1074, %v1116
    %v1118 = vpop.f32.mrf.mxu0
    %v1119 = vadd.f32 %v1076, %v1118
    %1120 = vdwg.mxu0
    %1121 = vmatprep.subr.bf16.mxu0 %v810
    %1122 = vmatpush1.bf16.msra.mxu0 %v809
    %1123 = vmatprep.subr.bf16.mxu0 %v806
    %1124 = vmatpush1.bf16.msra.mxu0 %v805
    %1125 = vmatprep.subr.bf16.mxu0 %v802
    %1126 = vmatpush1.bf16.msra.mxu0 %v801
    %1127 = vmatprep.subr.bf16.mxu0 %v798
    %1128 = vmatpush1.bf16.msra.mxu0 %v797
    %1129 = vmatprep.subr.bf16.mxu0 %v794
    %1130 = vmatpush1.bf16.msra.mxu0 %v793
    %1131 = vmatprep.subr.bf16.mxu0 %v790
    %1132 = vmatpush1.bf16.msra.mxu0 %v789
    %1133 = vmatprep.subr.bf16.mxu0 %v786
    %1134 = vmatpush1.bf16.msra.mxu0 %v785
    %1135 = vmatprep.subr.bf16.mxu0 %v782
    %1136 = vmatpush1.bf16.msra.mxu0 %v781
    %1137 = vmatprep.subr.bf16.mxu0 %v842
    %1138 = vmatpush2.bf16.msra.mxu0 %v841
    %1139 = vmatprep.subr.bf16.mxu0 %v838
    %1140 = vmatpush2.bf16.msra.mxu0 %v837
    %1141 = vmatprep.subr.bf16.mxu0 %v834
    %1142 = vmatpush2.bf16.msra.mxu0 %v833
    %1143 = vmatprep.subr.bf16.mxu0 %v830
    %1144 = vmatpush2.bf16.msra.mxu0 %v829
    %1145 = vmatprep.subr.bf16.mxu0 %v826
    %1146 = vmatpush2.bf16.msra.mxu0 %v825
    %1147 = vmatprep.subr.bf16.mxu0 %v822
    %1148 = vmatpush2.bf16.msra.mxu0 %v821
    %1149 = vmatprep.subr.bf16.mxu0 %v818
    %1150 = vmatpush2.bf16.msra.mxu0 %v817
    %1151 = vmatprep.subr.bf16.mxu0 %v814
    %1152 = vmatpush2.bf16.msra.mxu0 %v813
    %1153 = vmatprep.mubr.bf16.mxu0 %v136
    %1154 = vmatmul.mubr.bf16.gmra.mxu0 %v135
    %v1155 = vpop.f32.mrf.mxu0
    %v1156 = vadd.f32 0.0, %v1155
    %v1157 = vpop.f32.mrf.mxu0
    %v1158 = vadd.f32 0.0, %v1157
    %v1159 = vpop.f32.mrf.mxu0
    %v1160 = vadd.f32 0.0, %v1159
    %v1161 = vpop.f32.mrf.mxu0
    %v1162 = vadd.f32 0.0, %v1161
    %1163 = vdwg.mxu0
    %1164 = vmatprep.subr.bf16.mxu0 %v874
    %1165 = vmatpush1.bf16.msra.mxu0 %v873
    %1166 = vmatprep.subr.bf16.mxu0 %v870
    %1167 = vmatpush1.bf16.msra.mxu0 %v869
    %1168 = vmatprep.subr.bf16.mxu0 %v866
    %1169 = vmatpush1.bf16.msra.mxu0 %v865
    %1170 = vmatprep.subr.bf16.mxu0 %v862
    %1171 = vmatpush1.bf16.msra.mxu0 %v861
    %1172 = vmatprep.subr.bf16.mxu0 %v858
    %1173 = vmatpush1.bf16.msra.mxu0 %v857
    %1174 = vmatprep.subr.bf16.mxu0 %v854
    %1175 = vmatpush1.bf16.msra.mxu0 %v853
    %1176 = vmatprep.subr.bf16.mxu0 %v850
    %1177 = vmatpush1.bf16.msra.mxu0 %v849
    %1178 = vmatprep.subr.bf16.mxu0 %v846
    %1179 = vmatpush1.bf16.msra.mxu0 %v845
    %1180 = vmatprep.subr.bf16.mxu0 %v906
    %1181 = vmatpush2.bf16.msra.mxu0 %v905
    %1182 = vmatprep.subr.bf16.mxu0 %v902
    %1183 = vmatpush2.bf16.msra.mxu0 %v901
    %1184 = vmatprep.subr.bf16.mxu0 %v898
    %1185 = vmatpush2.bf16.msra.mxu0 %v897
    %1186 = vmatprep.subr.bf16.mxu0 %v894
    %1187 = vmatpush2.bf16.msra.mxu0 %v893
    %1188 = vmatprep.subr.bf16.mxu0 %v890
    %1189 = vmatpush2.bf16.msra.mxu0 %v889
    %1190 = vmatprep.subr.bf16.mxu0 %v886
    %1191 = vmatpush2.bf16.msra.mxu0 %v885
    %1192 = vmatprep.subr.bf16.mxu0 %v882
    %1193 = vmatpush2.bf16.msra.mxu0 %v881
    %1194 = vmatprep.subr.bf16.mxu0 %v878
    %1195 = vmatpush2.bf16.msra.mxu0 %v877
    %1196 = vmatprep.mubr.bf16.mxu0 %v138
    %1197 = vmatmul.mubr.bf16.gmra.mxu0 %v137
    %v1198 = vpop.f32.mrf.mxu0
    %v1199 = vadd.f32 %v1156, %v1198
    %v1200 = vpop.f32.mrf.mxu0
    %v1201 = vadd.f32 %v1158, %v1200
    %v1202 = vpop.f32.mrf.mxu0
    %v1203 = vadd.f32 %v1160, %v1202
    %v1204 = vpop.f32.mrf.mxu0
    %v1205 = vadd.f32 %v1162, %v1204
    %1206 = vdwg.mxu0
    %v1335 = vunpack.c.l.b16 %v139
    %v1336 = vunpack.c.h.b16 %v139
    %v1337 = vunpack.c.l.b16 %v140
    %v1338 = vunpack.c.h.b16 %v140
    %v1339 = vunpack.c.l.b16 %v141
    %v1340 = vunpack.c.h.b16 %v141
    %v1341 = vunpack.c.l.b16 %v142
    %v1342 = vunpack.c.h.b16 %v142
    %v1343 = vunpack.c.l.b16 %v143
    %v1344 = vunpack.c.h.b16 %v143
    %v1345 = vunpack.c.l.b16 %v144
    %v1346 = vunpack.c.h.b16 %v144
    %v1347 = vunpack.c.l.b16 %v145
    %v1348 = vunpack.c.h.b16 %v145
    %v1349 = vunpack.c.l.b16 %v146
    %v1350 = vunpack.c.h.b16 %v146
    %v1351 = vunpack.c.l.b16 %v147
    %v1352 = vunpack.c.h.b16 %v147
    %v1353 = vunpack.c.l.b16 %v148
    %v1354 = vunpack.c.h.b16 %v148
    %v1355 = vunpack.c.l.b16 %v149
    %v1356 = vunpack.c.h.b16 %v149
    %v1357 = vunpack.c.l.b16 %v150
    %v1358 = vunpack.c.h.b16 %v150
    %v1359 = vunpack.c.l.b16 %v151
    %v1360 = vunpack.c.h.b16 %v151
    %v1361 = vunpack.c.l.b16 %v152
    %v1362 = vunpack.c.h.b16 %v152
    %v1363 = vunpack.c.l.b16 %v153
    %v1364 = vunpack.c.h.b16 %v153
    %v1365 = vunpack.c.l.b16 %v154
    %v1366 = vunpack.c.h.b16 %v154
    %v1367 = vunpack.c.l.b16 %v155
    %v1368 = vunpack.c.h.b16 %v155
    %v1369 = vunpack.c.l.b16 %v156
    %v1370 = vunpack.c.h.b16 %v156
    %v1371 = vunpack.c.l.b16 %v157
    %v1372 = vunpack.c.h.b16 %v157
    %v1373 = vunpack.c.l.b16 %v158
    %v1374 = vunpack.c.h.b16 %v158
    %v1375 = vunpack.c.l.b16 %v159
    %v1376 = vunpack.c.h.b16 %v159
    %v1377 = vunpack.c.l.b16 %v160
    %v1378 = vunpack.c.h.b16 %v160
    %v1379 = vunpack.c.l.b16 %v161
    %v1380 = vunpack.c.h.b16 %v161
    %v1381 = vunpack.c.l.b16 %v162
    %v1382 = vunpack.c.h.b16 %v162
    %v1383 = vunpack.c.l.b16 %v163
    %v1384 = vunpack.c.h.b16 %v163
    %v1385 = vunpack.c.l.b16 %v164
    %v1386 = vunpack.c.h.b16 %v164
    %v1387 = vunpack.c.l.b16 %v165
    %v1388 = vunpack.c.h.b16 %v165
    %v1389 = vunpack.c.l.b16 %v166
    %v1390 = vunpack.c.h.b16 %v166
    %v1391 = vunpack.c.l.b16 %v167
    %v1392 = vunpack.c.h.b16 %v167
    %v1393 = vunpack.c.l.b16 %v168
    %v1394 = vunpack.c.h.b16 %v168
    %v1395 = vunpack.c.l.b16 %v169
    %v1396 = vunpack.c.h.b16 %v169
    %v1397 = vunpack.c.l.b16 %v170
    %v1398 = vunpack.c.h.b16 %v170
    %v1399 = vunpack.c.l.b16 %v171
    %v1400 = vunpack.c.h.b16 %v171
    %v1401 = vunpack.c.l.b16 %v172
    %v1402 = vunpack.c.h.b16 %v172
    %v1403 = vunpack.c.l.b16 %v173
    %v1404 = vunpack.c.h.b16 %v173
    %v1405 = vunpack.c.l.b16 %v174
    %v1406 = vunpack.c.h.b16 %v174
    %v1407 = vunpack.c.l.b16 %v175
    %v1408 = vunpack.c.h.b16 %v175
    %v1409 = vunpack.c.l.b16 %v176
    %v1410 = vunpack.c.h.b16 %v176
    %v1411 = vunpack.c.l.b16 %v177
    %v1412 = vunpack.c.h.b16 %v177
    %v1413 = vunpack.c.l.b16 %v178
    %v1414 = vunpack.c.h.b16 %v178
    %v1415 = vunpack.c.l.b16 %v179
    %v1416 = vunpack.c.h.b16 %v179
    %v1417 = vunpack.c.l.b16 %v180
    %v1418 = vunpack.c.h.b16 %v180
    %v1419 = vunpack.c.l.b16 %v181
    %v1420 = vunpack.c.h.b16 %v181
    %v1421 = vunpack.c.l.b16 %v182
    %v1422 = vunpack.c.h.b16 %v182
    %v1423 = vunpack.c.l.b16 %v183
    %v1424 = vunpack.c.h.b16 %v183
    %v1425 = vunpack.c.l.b16 %v184
    %v1426 = vunpack.c.h.b16 %v184
    %v1427 = vunpack.c.l.b16 %v185
    %v1428 = vunpack.c.h.b16 %v185
    %v1429 = vunpack.c.l.b16 %v186
    %v1430 = vunpack.c.h.b16 %v186
    %v1431 = vunpack.c.l.b16 %v187
    %v1432 = vunpack.c.h.b16 %v187
    %v1433 = vunpack.c.l.b16 %v188
    %v1434 = vunpack.c.h.b16 %v188
    %v1435 = vunpack.c.l.b16 %v189
    %v1436 = vunpack.c.h.b16 %v189
    %v1437 = vunpack.c.l.b16 %v190
    %v1438 = vunpack.c.h.b16 %v190
    %v1439 = vunpack.c.l.b16 %v191
    %v1440 = vunpack.c.h.b16 %v191
    %v1441 = vunpack.c.l.b16 %v192
    %v1442 = vunpack.c.h.b16 %v192
    %v1443 = vunpack.c.l.b16 %v193
    %v1444 = vunpack.c.h.b16 %v193
    %v1445 = vunpack.c.l.b16 %v194
    %v1446 = vunpack.c.h.b16 %v194
    %v1447 = vunpack.c.l.b16 %v195
    %v1448 = vunpack.c.h.b16 %v195
    %v1449 = vunpack.c.l.b16 %v196
    %v1450 = vunpack.c.h.b16 %v196
    %v1451 = vunpack.c.l.b16 %v197
    %v1452 = vunpack.c.h.b16 %v197
    %v1453 = vunpack.c.l.b16 %v198
    %v1454 = vunpack.c.h.b16 %v198
    %v1455 = vunpack.c.l.b16 %v199
    %v1456 = vunpack.c.h.b16 %v199
    %v1457 = vunpack.c.l.b16 %v200
    %v1458 = vunpack.c.h.b16 %v200
    %v1459 = vunpack.c.l.b16 %v201
    %v1460 = vunpack.c.h.b16 %v201
    %v1461 = vunpack.c.l.b16 %v202
    %v1462 = vunpack.c.h.b16 %v202
    %v1463 = vunpack.c.l.b16 %v203
    %v1464 = vunpack.c.h.b16 %v203
    %v1465 = vunpack.c.l.b16 %v204
    %v1466 = vunpack.c.h.b16 %v204
    %v1467 = vunpack.c.l.b16 %v205
    %v1468 = vunpack.c.h.b16 %v205
    %v1469 = vunpack.c.l.b16 %v206
    %v1470 = vunpack.c.h.b16 %v206
    %v1471 = vunpack.c.l.b16 %v207
    %v1472 = vunpack.c.h.b16 %v207
    %v1473 = vunpack.c.l.b16 %v208
    %v1474 = vunpack.c.h.b16 %v208
    %v1475 = vunpack.c.l.b16 %v209
    %v1476 = vunpack.c.h.b16 %v209
    %v1477 = vunpack.c.l.b16 %v210
    %v1478 = vunpack.c.h.b16 %v210
    %v1479 = vunpack.c.l.b16 %v211
    %v1480 = vunpack.c.h.b16 %v211
    %v1481 = vunpack.c.l.b16 %v212
    %v1482 = vunpack.c.h.b16 %v212
    %v1483 = vunpack.c.l.b16 %v213
    %v1484 = vunpack.c.h.b16 %v213
    %v1485 = vunpack.c.l.b16 %v214
    %v1486 = vunpack.c.h.b16 %v214
    %v1487 = vunpack.c.l.b16 %v215
    %v1488 = vunpack.c.h.b16 %v215
    %v1489 = vunpack.c.l.b16 %v216
    %v1490 = vunpack.c.h.b16 %v216
    %v1491 = vunpack.c.l.b16 %v217
    %v1492 = vunpack.c.h.b16 %v217
    %v1493 = vunpack.c.l.b16 %v218
    %v1494 = vunpack.c.h.b16 %v218
    %v1495 = vunpack.c.l.b16 %v219
    %v1496 = vunpack.c.h.b16 %v219
    %v1497 = vunpack.c.l.b16 %v220
    %v1498 = vunpack.c.h.b16 %v220
    %v1499 = vunpack.c.l.b16 %v221
    %v1500 = vunpack.c.h.b16 %v221
    %v1501 = vunpack.c.l.b16 %v222
    %v1502 = vunpack.c.h.b16 %v222
    %v1503 = vunpack.c.l.b16 %v223
    %v1504 = vunpack.c.h.b16 %v223
    %v1505 = vunpack.c.l.b16 %v224
    %v1506 = vunpack.c.h.b16 %v224
    %v1507 = vunpack.c.l.b16 %v225
    %v1508 = vunpack.c.h.b16 %v225
    %v1509 = vunpack.c.l.b16 %v226
    %v1510 = vunpack.c.h.b16 %v226
    %v1511 = vunpack.c.l.b16 %v227
    %v1512 = vunpack.c.h.b16 %v227
    %v1513 = vunpack.c.l.b16 %v228
    %v1514 = vunpack.c.h.b16 %v228
    %v1515 = vunpack.c.l.b16 %v229
    %v1516 = vunpack.c.h.b16 %v229
    %v1517 = vunpack.c.l.b16 %v230
    %v1518 = vunpack.c.h.b16 %v230
    %v1519 = vunpack.c.l.b16 %v231
    %v1520 = vunpack.c.h.b16 %v231
    %v1521 = vunpack.c.l.b16 %v232
    %v1522 = vunpack.c.h.b16 %v232
    %v1523 = vunpack.c.l.b16 %v233
    %v1524 = vunpack.c.h.b16 %v233
    %v1525 = vunpack.c.l.b16 %v234
    %v1526 = vunpack.c.h.b16 %v234
    %v1527 = vunpack.c.l.b16 %v235
    %v1528 = vunpack.c.h.b16 %v235
    %v1529 = vunpack.c.l.b16 %v236
    %v1530 = vunpack.c.h.b16 %v236
    %v1531 = vunpack.c.l.b16 %v237
    %v1532 = vunpack.c.h.b16 %v237
    %v1533 = vunpack.c.l.b16 %v238
    %v1534 = vunpack.c.h.b16 %v238
    %v1535 = vunpack.c.l.b16 %v239
    %v1536 = vunpack.c.h.b16 %v239
    %v1537 = vunpack.c.l.b16 %v240
    %v1538 = vunpack.c.h.b16 %v240
    %v1539 = vunpack.c.l.b16 %v241
    %v1540 = vunpack.c.h.b16 %v241
    %v1541 = vunpack.c.l.b16 %v242
    %v1542 = vunpack.c.h.b16 %v242
    %v1543 = vunpack.c.l.b16 %v243
    %v1544 = vunpack.c.h.b16 %v243
    %v1545 = vunpack.c.l.b16 %v244
    %v1546 = vunpack.c.h.b16 %v244
    %v1547 = vunpack.c.l.b16 %v245
    %v1548 = vunpack.c.h.b16 %v245
    %v1549 = vunpack.c.l.b16 %v246
    %v1550 = vunpack.c.h.b16 %v246
    %v1551 = vunpack.c.l.b16 %v247
    %v1552 = vunpack.c.h.b16 %v247
    %v1553 = vunpack.c.l.b16 %v248
    %v1554 = vunpack.c.h.b16 %v248
    %v1555 = vunpack.c.l.b16 %v249
    %v1556 = vunpack.c.h.b16 %v249
    %v1557 = vunpack.c.l.b16 %v250
    %v1558 = vunpack.c.h.b16 %v250
    %v1559 = vunpack.c.l.b16 %v251
    %v1560 = vunpack.c.h.b16 %v251
    %v1561 = vunpack.c.l.b16 %v252
    %v1562 = vunpack.c.h.b16 %v252
    %v1563 = vunpack.c.l.b16 %v253
    %v1564 = vunpack.c.h.b16 %v253
    %v1565 = vunpack.c.l.b16 %v254
    %v1566 = vunpack.c.h.b16 %v254
    %v1567 = vunpack.c.l.b16 %v255
    %v1568 = vunpack.c.h.b16 %v255
    %v1569 = vunpack.c.l.b16 %v256
    %v1570 = vunpack.c.h.b16 %v256
    %v1571 = vunpack.c.l.b16 %v257
    %v1572 = vunpack.c.h.b16 %v257
    %v1573 = vunpack.c.l.b16 %v258
    %v1574 = vunpack.c.h.b16 %v258
    %v1575 = vunpack.c.l.b16 %v259
    %v1576 = vunpack.c.h.b16 %v259
    %v1577 = vunpack.c.l.b16 %v260
    %v1578 = vunpack.c.h.b16 %v260
    %v1579 = vunpack.c.l.b16 %v261
    %v1580 = vunpack.c.h.b16 %v261
    %v1581 = vunpack.c.l.b16 %v262
    %v1582 = vunpack.c.h.b16 %v262
    %v1583 = vunpack.c.l.b16 %v263
    %v1584 = vunpack.c.h.b16 %v263
    %v1585 = vunpack.c.l.b16 %v264
    %v1586 = vunpack.c.h.b16 %v264
    %v1587 = vunpack.c.l.b16 %v265
    %v1588 = vunpack.c.h.b16 %v265
    %v1589 = vunpack.c.l.b16 %v266
    %v1590 = vunpack.c.h.b16 %v266
    %v1591 = vpack.c.b16 %v1339, %v1335
    %v1592 = vpack.c.b16 %v1340, %v1336
    %v1593 = vpack.c.b16 %v1341, %v1337
    %v1594 = vpack.c.b16 %v1342, %v1338
    %v1595 = vpack.c.b16 %v1347, %v1343
    %v1596 = vpack.c.b16 %v1348, %v1344
    %v1597 = vpack.c.b16 %v1349, %v1345
    %v1598 = vpack.c.b16 %v1350, %v1346
    %v1599 = vpack.c.b16 %v1355, %v1351
    %v1600 = vpack.c.b16 %v1356, %v1352
    %v1601 = vpack.c.b16 %v1357, %v1353
    %v1602 = vpack.c.b16 %v1358, %v1354
    %v1603 = vpack.c.b16 %v1363, %v1359
    %v1604 = vpack.c.b16 %v1364, %v1360
    %v1605 = vpack.c.b16 %v1365, %v1361
    %v1606 = vpack.c.b16 %v1366, %v1362
    %v1607 = vpack.c.b16 %v1371, %v1367
    %v1608 = vpack.c.b16 %v1372, %v1368
    %v1609 = vpack.c.b16 %v1373, %v1369
    %v1610 = vpack.c.b16 %v1374, %v1370
    %v1611 = vpack.c.b16 %v1379, %v1375
    %v1612 = vpack.c.b16 %v1380, %v1376
    %v1613 = vpack.c.b16 %v1381, %v1377
    %v1614 = vpack.c.b16 %v1382, %v1378
    %v1615 = vpack.c.b16 %v1387, %v1383
    %v1616 = vpack.c.b16 %v1388, %v1384
    %v1617 = vpack.c.b16 %v1389, %v1385
    %v1618 = vpack.c.b16 %v1390, %v1386
    %v1619 = vpack.c.b16 %v1395, %v1391
    %v1620 = vpack.c.b16 %v1396, %v1392
    %v1621 = vpack.c.b16 %v1397, %v1393
    %v1622 = vpack.c.b16 %v1398, %v1394
    %v1623 = vpack.c.b16 %v1403, %v1399
    %v1624 = vpack.c.b16 %v1404, %v1400
    %v1625 = vpack.c.b16 %v1405, %v1401
    %v1626 = vpack.c.b16 %v1406, %v1402
    %v1627 = vpack.c.b16 %v1411, %v1407
    %v1628 = vpack.c.b16 %v1412, %v1408
    %v1629 = vpack.c.b16 %v1413, %v1409
    %v1630 = vpack.c.b16 %v1414, %v1410
    %v1631 = vpack.c.b16 %v1419, %v1415
    %v1632 = vpack.c.b16 %v1420, %v1416
    %v1633 = vpack.c.b16 %v1421, %v1417
    %v1634 = vpack.c.b16 %v1422, %v1418
    %v1635 = vpack.c.b16 %v1427, %v1423
    %v1636 = vpack.c.b16 %v1428, %v1424
    %v1637 = vpack.c.b16 %v1429, %v1425
    %v1638 = vpack.c.b16 %v1430, %v1426
    %v1639 = vpack.c.b16 %v1435, %v1431
    %v1640 = vpack.c.b16 %v1436, %v1432
    %v1641 = vpack.c.b16 %v1437, %v1433
    %v1642 = vpack.c.b16 %v1438, %v1434
    %v1643 = vpack.c.b16 %v1443, %v1439
    %v1644 = vpack.c.b16 %v1444, %v1440
    %v1645 = vpack.c.b16 %v1445, %v1441
    %v1646 = vpack.c.b16 %v1446, %v1442
    %v1647 = vpack.c.b16 %v1451, %v1447
    %v1648 = vpack.c.b16 %v1452, %v1448
    %v1649 = vpack.c.b16 %v1453, %v1449
    %v1650 = vpack.c.b16 %v1454, %v1450
    %v1651 = vpack.c.b16 %v1459, %v1455
    %v1652 = vpack.c.b16 %v1460, %v1456
    %v1653 = vpack.c.b16 %v1461, %v1457
    %v1654 = vpack.c.b16 %v1462, %v1458
    %v1655 = vpack.c.b16 %v1467, %v1463
    %v1656 = vpack.c.b16 %v1468, %v1464
    %v1657 = vpack.c.b16 %v1469, %v1465
    %v1658 = vpack.c.b16 %v1470, %v1466
    %v1659 = vpack.c.b16 %v1475, %v1471
    %v1660 = vpack.c.b16 %v1476, %v1472
    %v1661 = vpack.c.b16 %v1477, %v1473
    %v1662 = vpack.c.b16 %v1478, %v1474
    %v1663 = vpack.c.b16 %v1483, %v1479
    %v1664 = vpack.c.b16 %v1484, %v1480
    %v1665 = vpack.c.b16 %v1485, %v1481
    %v1666 = vpack.c.b16 %v1486, %v1482
    %v1667 = vpack.c.b16 %v1491, %v1487
    %v1668 = vpack.c.b16 %v1492, %v1488
    %v1669 = vpack.c.b16 %v1493, %v1489
    %v1670 = vpack.c.b16 %v1494, %v1490
    %v1671 = vpack.c.b16 %v1499, %v1495
    %v1672 = vpack.c.b16 %v1500, %v1496
    %v1673 = vpack.c.b16 %v1501, %v1497
    %v1674 = vpack.c.b16 %v1502, %v1498
    %v1675 = vpack.c.b16 %v1507, %v1503
    %v1676 = vpack.c.b16 %v1508, %v1504
    %v1677 = vpack.c.b16 %v1509, %v1505
    %v1678 = vpack.c.b16 %v1510, %v1506
    %v1679 = vpack.c.b16 %v1515, %v1511
    %v1680 = vpack.c.b16 %v1516, %v1512
    %v1681 = vpack.c.b16 %v1517, %v1513
    %v1682 = vpack.c.b16 %v1518, %v1514
    %v1683 = vpack.c.b16 %v1523, %v1519
    %v1684 = vpack.c.b16 %v1524, %v1520
    %v1685 = vpack.c.b16 %v1525, %v1521
    %v1686 = vpack.c.b16 %v1526, %v1522
    %v1687 = vpack.c.b16 %v1531, %v1527
    %v1688 = vpack.c.b16 %v1532, %v1528
    %v1689 = vpack.c.b16 %v1533, %v1529
    %v1690 = vpack.c.b16 %v1534, %v1530
    %v1691 = vpack.c.b16 %v1539, %v1535
    %v1692 = vpack.c.b16 %v1540, %v1536
    %v1693 = vpack.c.b16 %v1541, %v1537
    %v1694 = vpack.c.b16 %v1542, %v1538
    %v1695 = vpack.c.b16 %v1547, %v1543
    %v1696 = vpack.c.b16 %v1548, %v1544
    %v1697 = vpack.c.b16 %v1549, %v1545
    %v1698 = vpack.c.b16 %v1550, %v1546
    %v1699 = vpack.c.b16 %v1555, %v1551
    %v1700 = vpack.c.b16 %v1556, %v1552
    %v1701 = vpack.c.b16 %v1557, %v1553
    %v1702 = vpack.c.b16 %v1558, %v1554
    %v1703 = vpack.c.b16 %v1563, %v1559
    %v1704 = vpack.c.b16 %v1564, %v1560
    %v1705 = vpack.c.b16 %v1565, %v1561
    %v1706 = vpack.c.b16 %v1566, %v1562
    %v1707 = vpack.c.b16 %v1571, %v1567
    %v1708 = vpack.c.b16 %v1572, %v1568
    %v1709 = vpack.c.b16 %v1573, %v1569
    %v1710 = vpack.c.b16 %v1574, %v1570
    %v1711 = vpack.c.b16 %v1579, %v1575
    %v1712 = vpack.c.b16 %v1580, %v1576
    %v1713 = vpack.c.b16 %v1581, %v1577
    %v1714 = vpack.c.b16 %v1582, %v1578
    %v1715 = vpack.c.b16 %v1587, %v1583
    %v1716 = vpack.c.b16 %v1588, %v1584
    %v1717 = vpack.c.b16 %v1589, %v1585
    %v1718 = vpack.c.b16 %v1590, %v1586
    %1847 = vmatprep.subr.bf16.mxu0 %v1620
    %1848 = vmatpush1.bf16.msra.mxu0 %v1619
    %1849 = vmatprep.subr.bf16.mxu0 %v1616
    %1850 = vmatpush1.bf16.msra.mxu0 %v1615
    %1851 = vmatprep.subr.bf16.mxu0 %v1612
    %1852 = vmatpush1.bf16.msra.mxu0 %v1611
    %1853 = vmatprep.subr.bf16.mxu0 %v1608
    %1854 = vmatpush1.bf16.msra.mxu0 %v1607
    %1855 = vmatprep.subr.bf16.mxu0 %v1604
    %1856 = vmatpush1.bf16.msra.mxu0 %v1603
    %1857 = vmatprep.subr.bf16.mxu0 %v1600
    %1858 = vmatpush1.bf16.msra.mxu0 %v1599
    %1859 = vmatprep.subr.bf16.mxu0 %v1596
    %1860 = vmatpush1.bf16.msra.mxu0 %v1595
    %1861 = vmatprep.subr.bf16.mxu0 %v1592
    %1862 = vmatpush1.bf16.msra.mxu0 %v1591
    %1863 = vmatprep.subr.bf16.mxu0 %v1652
    %1864 = vmatpush2.bf16.msra.mxu0 %v1651
    %1865 = vmatprep.subr.bf16.mxu0 %v1648
    %1866 = vmatpush2.bf16.msra.mxu0 %v1647
    %1867 = vmatprep.subr.bf16.mxu0 %v1644
    %1868 = vmatpush2.bf16.msra.mxu0 %v1643
    %1869 = vmatprep.subr.bf16.mxu0 %v1640
    %1870 = vmatpush2.bf16.msra.mxu0 %v1639
    %1871 = vmatprep.subr.bf16.mxu0 %v1636
    %1872 = vmatpush2.bf16.msra.mxu0 %v1635
    %1873 = vmatprep.subr.bf16.mxu0 %v1632
    %1874 = vmatpush2.bf16.msra.mxu0 %v1631
    %1875 = vmatprep.subr.bf16.mxu0 %v1628
    %1876 = vmatpush2.bf16.msra.mxu0 %v1627
    %1877 = vmatprep.subr.bf16.mxu0 %v1624
    %1878 = vmatpush2.bf16.msra.mxu0 %v1623
    %1879 = vmatprep.mubr.bf16.mxu0 %v124
    %1880 = vmatmul.mubr.bf16.gmra.mxu0 %v123
    %v1881 = vpop.f32.mrf.mxu0
    %v1882 = vadd.f32 %v1113, %v1881
    %v1883 = vpop.f32.mrf.mxu0
    %v1884 = vadd.f32 %v1115, %v1883
    %v1885 = vpop.f32.mrf.mxu0
    %v1886 = vadd.f32 %v1117, %v1885
    %v1887 = vpop.f32.mrf.mxu0
    %v1888 = vadd.f32 %v1119, %v1887
    %1889 = vdwg.mxu0
    %1890 = vmatprep.subr.bf16.mxu0 %v1684
    %1891 = vmatpush1.bf16.msra.mxu0 %v1683
    %1892 = vmatprep.subr.bf16.mxu0 %v1680
    %1893 = vmatpush1.bf16.msra.mxu0 %v1679
    %1894 = vmatprep.subr.bf16.mxu0 %v1676
    %1895 = vmatpush1.bf16.msra.mxu0 %v1675
    %1896 = vmatprep.subr.bf16.mxu0 %v1672
    %1897 = vmatpush1.bf16.msra.mxu0 %v1671
    %1898 = vmatprep.subr.bf16.mxu0 %v1668
    %1899 = vmatpush1.bf16.msra.mxu0 %v1667
    %1900 = vmatprep.subr.bf16.mxu0 %v1664
    %1901 = vmatpush1.bf16.msra.mxu0 %v1663
    %1902 = vmatprep.subr.bf16.mxu0 %v1660
    %1903 = vmatpush1.bf16.msra.mxu0 %v1659
    %1904 = vmatprep.subr.bf16.mxu0 %v1656
    %1905 = vmatpush1.bf16.msra.mxu0 %v1655
    %1906 = vmatprep.subr.bf16.mxu0 %v1716
    %1907 = vmatpush2.bf16.msra.mxu0 %v1715
    %1908 = vmatprep.subr.bf16.mxu0 %v1712
    %1909 = vmatpush2.bf16.msra.mxu0 %v1711
    %1910 = vmatprep.subr.bf16.mxu0 %v1708
    %1911 = vmatpush2.bf16.msra.mxu0 %v1707
    %1912 = vmatprep.subr.bf16.mxu0 %v1704
    %1913 = vmatpush2.bf16.msra.mxu0 %v1703
    %1914 = vmatprep.subr.bf16.mxu0 %v1700
    %1915 = vmatpush2.bf16.msra.mxu0 %v1699
    %1916 = vmatprep.subr.bf16.mxu0 %v1696
    %1917 = vmatpush2.bf16.msra.mxu0 %v1695
    %1918 = vmatprep.subr.bf16.mxu0 %v1692
    %1919 = vmatpush2.bf16.msra.mxu0 %v1691
    %1920 = vmatprep.subr.bf16.mxu0 %v1688
    %1921 = vmatpush2.bf16.msra.mxu0 %v1687
    %1922 = vmatprep.mubr.bf16.mxu0 %v126
    %1923 = vmatmul.mubr.bf16.gmra.mxu0 %v125
    %v1924 = vpop.f32.mrf.mxu0
    %v1925 = vadd.f32 %v1882, %v1924
    %v1926 = vpop.f32.mrf.mxu0
    %v1927 = vadd.f32 %v1884, %v1926
    %v1928 = vpop.f32.mrf.mxu0
    %v1929 = vadd.f32 %v1886, %v1928
    %v1930 = vpop.f32.mrf.mxu0
    %v1931 = vadd.f32 %v1888, %v1930
    %1932 = vdwg.mxu0
    %1933 = vmatprep.subr.bf16.mxu0 %v1622
    %1934 = vmatpush1.bf16.msra.mxu0 %v1621
    %1935 = vmatprep.subr.bf16.mxu0 %v1618
    %1936 = vmatpush1.bf16.msra.mxu0 %v1617
    %1937 = vmatprep.subr.bf16.mxu0 %v1614
    %1938 = vmatpush1.bf16.msra.mxu0 %v1613
    %1939 = vmatprep.subr.bf16.mxu0 %v1610
    %1940 = vmatpush1.bf16.msra.mxu0 %v1609
    %1941 = vmatprep.subr.bf16.mxu0 %v1606
    %1942 = vmatpush1.bf16.msra.mxu0 %v1605
    %1943 = vmatprep.subr.bf16.mxu0 %v1602
    %1944 = vmatpush1.bf16.msra.mxu0 %v1601
    %1945 = vmatprep.subr.bf16.mxu0 %v1598
    %1946 = vmatpush1.bf16.msra.mxu0 %v1597
    %1947 = vmatprep.subr.bf16.mxu0 %v1594
    %1948 = vmatpush1.bf16.msra.mxu0 %v1593
    %1949 = vmatprep.subr.bf16.mxu0 %v1654
    %1950 = vmatpush2.bf16.msra.mxu0 %v1653
    %1951 = vmatprep.subr.bf16.mxu0 %v1650
    %1952 = vmatpush2.bf16.msra.mxu0 %v1649
    %1953 = vmatprep.subr.bf16.mxu0 %v1646
    %1954 = vmatpush2.bf16.msra.mxu0 %v1645
    %1955 = vmatprep.subr.bf16.mxu0 %v1642
    %1956 = vmatpush2.bf16.msra.mxu0 %v1641
    %1957 = vmatprep.subr.bf16.mxu0 %v1638
    %1958 = vmatpush2.bf16.msra.mxu0 %v1637
    %1959 = vmatprep.subr.bf16.mxu0 %v1634
    %1960 = vmatpush2.bf16.msra.mxu0 %v1633
    %1961 = vmatprep.subr.bf16.mxu0 %v1630
    %1962 = vmatpush2.bf16.msra.mxu0 %v1629
    %1963 = vmatprep.subr.bf16.mxu0 %v1626
    %1964 = vmatpush2.bf16.msra.mxu0 %v1625
    %1965 = vmatprep.mubr.bf16.mxu0 %v124
    %1966 = vmatmul.mubr.bf16.gmra.mxu0 %v123
    %v1967 = vpop.f32.mrf.mxu0
    %v1968 = vadd.f32 %v1199, %v1967
    %v1969 = vpop.f32.mrf.mxu0
    %v1970 = vadd.f32 %v1201, %v1969
    %v1971 = vpop.f32.mrf.mxu0
    %v1972 = vadd.f32 %v1203, %v1971
    %v1973 = vpop.f32.mrf.mxu0
    %v1974 = vadd.f32 %v1205, %v1973
    %1975 = vdwg.mxu0
    %1976 = vmatprep.subr.bf16.mxu0 %v1686
    %1977 = vmatpush1.bf16.msra.mxu0 %v1685
    %1978 = vmatprep.subr.bf16.mxu0 %v1682
    %1979 = vmatpush1.bf16.msra.mxu0 %v1681
    %1980 = vmatprep.subr.bf16.mxu0 %v1678
    %1981 = vmatpush1.bf16.msra.mxu0 %v1677
    %1982 = vmatprep.subr.bf16.mxu0 %v1674
    %1983 = vmatpush1.bf16.msra.mxu0 %v1673
    %1984 = vmatprep.subr.bf16.mxu0 %v1670
    %1985 = vmatpush1.bf16.msra.mxu0 %v1669
    %1986 = vmatprep.subr.bf16.mxu0 %v1666
    %1987 = vmatpush1.bf16.msra.mxu0 %v1665
    %1988 = vmatprep.subr.bf16.mxu0 %v1662
    %1989 = vmatpush1.bf16.msra.mxu0 %v1661
    %1990 = vmatprep.subr.bf16.mxu0 %v1658
    %1991 = vmatpush1.bf16.msra.mxu0 %v1657
    %1992 = vmatprep.subr.bf16.mxu0 %v1718
    %1993 = vmatpush2.bf16.msra.mxu0 %v1717
    %1994 = vmatprep.subr.bf16.mxu0 %v1714
    %1995 = vmatpush2.bf16.msra.mxu0 %v1713
    %1996 = vmatprep.subr.bf16.mxu0 %v1710
    %1997 = vmatpush2.bf16.msra.mxu0 %v1709
    %1998 = vmatprep.subr.bf16.mxu0 %v1706
    %1999 = vmatpush2.bf16.msra.mxu0 %v1705
    %2000 = vmatprep.subr.bf16.mxu0 %v1702
    %2001 = vmatpush2.bf16.msra.mxu0 %v1701
    %2002 = vmatprep.subr.bf16.mxu0 %v1698
    %2003 = vmatpush2.bf16.msra.mxu0 %v1697
    %2004 = vmatprep.subr.bf16.mxu0 %v1694
    %2005 = vmatpush2.bf16.msra.mxu0 %v1693
    %2006 = vmatprep.subr.bf16.mxu0 %v1690
    %2007 = vmatpush2.bf16.msra.mxu0 %v1689
    %2008 = vmatprep.mubr.bf16.mxu0 %v126
    %2009 = vmatmul.mubr.bf16.gmra.mxu0 %v125
    %v2010 = vpop.f32.mrf.mxu0
    %v2011 = vadd.f32 %v1968, %v2010
    %v2012 = vpop.f32.mrf.mxu0
    %v2013 = vadd.f32 %v1970, %v2012
    %v2014 = vpop.f32.mrf.mxu0
    %v2015 = vadd.f32 %v1972, %v2014
    %v2016 = vpop.f32.mrf.mxu0
    %v2017 = vadd.f32 %v1974, %v2016
    %2018 = vdwg.mxu0
    %v2019 = vld [vmem:[%s4] sm:$0xf]
    %v2021 = vlaneseq
    %v2022 = vshrl.u32 %v2021, 7
    %v2023 = vsub.s32 0, %v2022
    %v2024 = vrot.slane %v2019, %v2023
    %v2025 = vlaneseq
    %v2026 = vshrl.u32 %v2025, 7
    %v2027 = vsub.s32 1, %v2026
    %v2028 = vrot.slane %v2019, %v2027
    %v2029 = vlaneseq
    %v2030 = vshrl.u32 %v2029, 7
    %v2031 = vsub.s32 2, %v2030
    %v2032 = vrot.slane %v2019, %v2031
    %v2033 = vlaneseq
    %v2034 = vshrl.u32 %v2033, 7
    %v2035 = vsub.s32 3, %v2034
    %v2036 = vrot.slane %v2019, %v2035
    %v2041 = vadd.f32 %v1925, %v2024
    %v2042 = vadd.f32 %v1927, %v2028
    %v2043 = vadd.f32 %v2011, %v2032
    %v2044 = vadd.f32 %v2013, %v2036
    %v2045 = vadd.f32 %v1929, %v2024
    %v2046 = vadd.f32 %v1931, %v2028
    %v2047 = vadd.f32 %v2015, %v2032
    %v2048 = vadd.f32 %v2017, %v2036
    %v2049 = vmax.f32 %v2041, 0.0
    %v2050 = vmax.f32 %v2042, 0.0
    %v2051 = vmax.f32 %v2043, 0.0
    %v2052 = vmax.f32 %v2044, 0.0
    %v2053 = vmax.f32 %v2045, 0.0
    %v2054 = vmax.f32 %v2046, 0.0
    %v2055 = vmax.f32 %v2047, 0.0
    %v2056 = vmax.f32 %v2048, 0.0
    %v2057 = vpack.c.bf16 %v2053, %v2049
    %v2058 = vpack.c.bf16 %v2054, %v2050
    %v2059 = vpack.c.bf16 %v2055, %v2051
    %v2060 = vpack.c.bf16 %v2056, %v2052
    %v2061 = vld [vmem:[#allocation9] sm:$0xf]
    %v2062 = vld [vmem:[#allocation9 + $0x4] sm:$0xf]
    %v2063 = vld [vmem:[#allocation9 + $0x8] sm:$0xf]
    %v2064 = vld [vmem:[#allocation9 + $0xc] sm:$0xf]
    %v2065 = vld [vmem:[#allocation9 + $0x10] sm:$0xf]
    %v2066 = vld [vmem:[#allocation9 + $0x14] sm:$0xf]
    %v2067 = vld [vmem:[#allocation9 + $0x18] sm:$0xf]
    %v2068 = vld [vmem:[#allocation9 + $0x1c] sm:$0xf]
    %v2069 = vld [vmem:[#allocation9 + $0x20] sm:$0xf]
    %v2070 = vld [vmem:[#allocation9 + $0x24] sm:$0xf]
    %v2071 = vld [vmem:[#allocation9 + $0x28] sm:$0xf]
    %v2072 = vld [vmem:[#allocation9 + $0x2c] sm:$0xf]
    %v2073 = vld [vmem:[#allocation9 + $0x30] sm:$0xf]
    %v2074 = vld [vmem:[#allocation9 + $0x34] sm:$0xf]
    %v2075 = vld [vmem:[#allocation9 + $0x38] sm:$0xf]
    %v2076 = vld [vmem:[#allocation9 + $0x3c] sm:$0xf]
    %v2077 = vld [vmem:[#allocation9 + $0x40] sm:$0xf]
    %v2078 = vld [vmem:[#allocation9 + $0x44] sm:$0xf]
    %v2079 = vld [vmem:[#allocation9 + $0x48] sm:$0xf]
    %v2080 = vld [vmem:[#allocation9 + $0x4c] sm:$0xf]
    %v2081 = vld [vmem:[#allocation9 + $0x50] sm:$0xf]
    %v2082 = vld [vmem:[#allocation9 + $0x54] sm:$0xf]
    %v2083 = vld [vmem:[#allocation9 + $0x58] sm:$0xf]
    %v2084 = vld [vmem:[#allocation9 + $0x5c] sm:$0xf]
    %v2085 = vld [vmem:[#allocation9 + $0x60] sm:$0xf]
    %v2086 = vld [vmem:[#allocation9 + $0x64] sm:$0xf]
    %v2087 = vld [vmem:[#allocation9 + $0x68] sm:$0xf]
    %v2088 = vld [vmem:[#allocation9 + $0x6c] sm:$0xf]
    %v2089 = vld [vmem:[#allocation9 + $0x70] sm:$0xf]
    %v2090 = vld [vmem:[#allocation9 + $0x74] sm:$0xf]
    %v2091 = vld [vmem:[#allocation9 + $0x78] sm:$0xf]
    %v2092 = vld [vmem:[#allocation9 + $0x7c] sm:$0xf]
    %v2093 = vld [vmem:[#allocation9 + $0x80] sm:$0xf]
    %v2094 = vld [vmem:[#allocation9 + $0x84] sm:$0xf]
    %v2095 = vld [vmem:[#allocation9 + $0x88] sm:$0xf]
    %v2096 = vld [vmem:[#allocation9 + $0x8c] sm:$0xf]
    %v2097 = vld [vmem:[#allocation9 + $0x90] sm:$0xf]
    %v2098 = vld [vmem:[#allocation9 + $0x94] sm:$0xf]
    %v2099 = vld [vmem:[#allocation9 + $0x98] sm:$0xf]
    %v2100 = vld [vmem:[#allocation9 + $0x9c] sm:$0xf]
    %v2101 = vld [vmem:[#allocation9 + $0xa0] sm:$0xf]
    %v2102 = vld [vmem:[#allocation9 + $0xa4] sm:$0xf]
    %v2103 = vld [vmem:[#allocation9 + $0xa8] sm:$0xf]
    %v2104 = vld [vmem:[#allocation9 + $0xac] sm:$0xf]
    %v2105 = vld [vmem:[#allocation9 + $0xb0] sm:$0xf]
    %v2106 = vld [vmem:[#allocation9 + $0xb4] sm:$0xf]
    %v2107 = vld [vmem:[#allocation9 + $0xb8] sm:$0xf]
    %v2108 = vld [vmem:[#allocation9 + $0xbc] sm:$0xf]
    %v2109 = vld [vmem:[#allocation9 + $0xc0] sm:$0xf]
    %v2110 = vld [vmem:[#allocation9 + $0xc4] sm:$0xf]
    %v2111 = vld [vmem:[#allocation9 + $0xc8] sm:$0xf]
    %v2112 = vld [vmem:[#allocation9 + $0xcc] sm:$0xf]
    %v2113 = vld [vmem:[#allocation9 + $0xd0] sm:$0xf]
    %v2114 = vld [vmem:[#allocation9 + $0xd4] sm:$0xf]
    %v2115 = vld [vmem:[#allocation9 + $0xd8] sm:$0xf]
    %v2116 = vld [vmem:[#allocation9 + $0xdc] sm:$0xf]
    %v2117 = vld [vmem:[#allocation9 + $0xe0] sm:$0xf]
    %v2118 = vld [vmem:[#allocation9 + $0xe4] sm:$0xf]
    %v2119 = vld [vmem:[#allocation9 + $0xe8] sm:$0xf]
    %v2120 = vld [vmem:[#allocation9 + $0xec] sm:$0xf]
    %v2121 = vld [vmem:[#allocation9 + $0xf0] sm:$0xf]
    %v2122 = vld [vmem:[#allocation9 + $0xf4] sm:$0xf]
    %v2123 = vld [vmem:[#allocation9 + $0xf8] sm:$0xf]
    %v2124 = vld [vmem:[#allocation9 + $0xfc] sm:$0xf]
    %v2125 = vld [vmem:[%s6] sm:$0x1]
    %v2127 = vlaneseq
    %v2128 = vshrl.u32 %v2127, 7
    %v2129 = vsub.s32 0, %v2128
    %v2130 = vrot.slane %v2125, %v2129
    %v2196 = vunpack.c.l.b16 %v2061
    %v2197 = vunpack.c.l.b16 %v2062
    %v2198 = vunpack.c.l.b16 %v2063
    %v2199 = vunpack.c.l.b16 %v2064
    %v2200 = vunpack.c.l.b16 %v2065
    %v2201 = vunpack.c.l.b16 %v2066
    %v2202 = vunpack.c.l.b16 %v2067
    %v2203 = vunpack.c.l.b16 %v2068
    %v2204 = vunpack.c.l.b16 %v2069
    %v2205 = vunpack.c.l.b16 %v2070
    %v2206 = vunpack.c.l.b16 %v2071
    %v2207 = vunpack.c.l.b16 %v2072
    %v2208 = vunpack.c.l.b16 %v2073
    %v2209 = vunpack.c.l.b16 %v2074
    %v2210 = vunpack.c.l.b16 %v2075
    %v2211 = vunpack.c.l.b16 %v2076
    %v2212 = vunpack.c.l.b16 %v2077
    %v2213 = vunpack.c.l.b16 %v2078
    %v2214 = vunpack.c.l.b16 %v2079
    %v2215 = vunpack.c.l.b16 %v2080
    %v2216 = vunpack.c.l.b16 %v2081
    %v2217 = vunpack.c.l.b16 %v2082
    %v2218 = vunpack.c.l.b16 %v2083
    %v2219 = vunpack.c.l.b16 %v2084
    %v2220 = vunpack.c.l.b16 %v2085
    %v2221 = vunpack.c.l.b16 %v2086
    %v2222 = vunpack.c.l.b16 %v2087
    %v2223 = vunpack.c.l.b16 %v2088
    %v2224 = vunpack.c.l.b16 %v2089
    %v2225 = vunpack.c.l.b16 %v2090
    %v2226 = vunpack.c.l.b16 %v2091
    %v2227 = vunpack.c.l.b16 %v2092
    %v2228 = vunpack.c.l.b16 %v2093
    %v2229 = vunpack.c.l.b16 %v2094
    %v2230 = vunpack.c.l.b16 %v2095
    %v2231 = vunpack.c.l.b16 %v2096
    %v2232 = vunpack.c.l.b16 %v2097
    %v2233 = vunpack.c.l.b16 %v2098
    %v2234 = vunpack.c.l.b16 %v2099
    %v2235 = vunpack.c.l.b16 %v2100
    %v2236 = vunpack.c.l.b16 %v2101
    %v2237 = vunpack.c.l.b16 %v2102
    %v2238 = vunpack.c.l.b16 %v2103
    %v2239 = vunpack.c.l.b16 %v2104
    %v2240 = vunpack.c.l.b16 %v2105
    %v2241 = vunpack.c.l.b16 %v2106
    %v2242 = vunpack.c.l.b16 %v2107
    %v2243 = vunpack.c.l.b16 %v2108
    %v2244 = vunpack.c.l.b16 %v2109
    %v2245 = vunpack.c.l.b16 %v2110
    %v2246 = vunpack.c.l.b16 %v2111
    %v2247 = vunpack.c.l.b16 %v2112
    %v2248 = vunpack.c.l.b16 %v2113
    %v2249 = vunpack.c.l.b16 %v2114
    %v2250 = vunpack.c.l.b16 %v2115
    %v2251 = vunpack.c.l.b16 %v2116
    %v2252 = vunpack.c.l.b16 %v2117
    %v2253 = vunpack.c.l.b16 %v2118
    %v2254 = vunpack.c.l.b16 %v2119
    %v2255 = vunpack.c.l.b16 %v2120
    %v2256 = vunpack.c.l.b16 %v2121
    %v2257 = vunpack.c.l.b16 %v2122
    %v2258 = vunpack.c.l.b16 %v2123
    %v2259 = vunpack.c.l.b16 %v2124
    %v2260 = vpack.c.b16 %v2197, %v2196
    %v2261 = vpack.c.b16 %v2199, %v2198
    %v2262 = vpack.c.b16 %v2201, %v2200
    %v2263 = vpack.c.b16 %v2203, %v2202
    %v2264 = vpack.c.b16 %v2205, %v2204
    %v2265 = vpack.c.b16 %v2207, %v2206
    %v2266 = vpack.c.b16 %v2209, %v2208
    %v2267 = vpack.c.b16 %v2211, %v2210
    %v2268 = vpack.c.b16 %v2213, %v2212
    %v2269 = vpack.c.b16 %v2215, %v2214
    %v2270 = vpack.c.b16 %v2217, %v2216
    %v2271 = vpack.c.b16 %v2219, %v2218
    %v2272 = vpack.c.b16 %v2221, %v2220
    %v2273 = vpack.c.b16 %v2223, %v2222
    %v2274 = vpack.c.b16 %v2225, %v2224
    %v2275 = vpack.c.b16 %v2227, %v2226
    %v2276 = vpack.c.b16 %v2229, %v2228
    %v2277 = vpack.c.b16 %v2231, %v2230
    %v2278 = vpack.c.b16 %v2233, %v2232
    %v2279 = vpack.c.b16 %v2235, %v2234
    %v2280 = vpack.c.b16 %v2237, %v2236
    %v2281 = vpack.c.b16 %v2239, %v2238
    %v2282 = vpack.c.b16 %v2241, %v2240
    %v2283 = vpack.c.b16 %v2243, %v2242
    %v2284 = vpack.c.b16 %v2245, %v2244
    %v2285 = vpack.c.b16 %v2247, %v2246
    %v2286 = vpack.c.b16 %v2249, %v2248
    %v2287 = vpack.c.b16 %v2251, %v2250
    %v2288 = vpack.c.b16 %v2253, %v2252
    %v2289 = vpack.c.b16 %v2255, %v2254
    %v2290 = vpack.c.b16 %v2257, %v2256
    %v2291 = vpack.c.b16 %v2259, %v2258
    %2324 = vmatprep.subr.bf16.mxu0 0
    %2325 = vmatpush1.bf16.msra.mxu0 %v2267
    %2326 = vmatprep.subr.bf16.mxu0 0
    %2327 = vmatpush1.bf16.msra.mxu0 %v2266
    %2328 = vmatprep.subr.bf16.mxu0 0
    %2329 = vmatpush1.bf16.msra.mxu0 %v2265
    %2330 = vmatprep.subr.bf16.mxu0 0
    %2331 = vmatpush1.bf16.msra.mxu0 %v2264
    %2332 = vmatprep.subr.bf16.mxu0 0
    %2333 = vmatpush1.bf16.msra.mxu0 %v2263
    %2334 = vmatprep.subr.bf16.mxu0 0
    %2335 = vmatpush1.bf16.msra.mxu0 %v2262
    %2336 = vmatprep.subr.bf16.mxu0 0
    %2337 = vmatpush1.bf16.msra.mxu0 %v2261
    %2338 = vmatprep.subr.bf16.mxu0 0
    %2339 = vmatpush1.bf16.msra.mxu0 %v2260
    %2340 = vmatprep.subr.bf16.mxu0 0
    %2341 = vmatpush2.bf16.msra.mxu0 %v2275
    %2342 = vmatprep.subr.bf16.mxu0 0
    %2343 = vmatpush2.bf16.msra.mxu0 %v2274
    %2344 = vmatprep.subr.bf16.mxu0 0
    %2345 = vmatpush2.bf16.msra.mxu0 %v2273
    %2346 = vmatprep.subr.bf16.mxu0 0
    %2347 = vmatpush2.bf16.msra.mxu0 %v2272
    %2348 = vmatprep.subr.bf16.mxu0 0
    %2349 = vmatpush2.bf16.msra.mxu0 %v2271
    %2350 = vmatprep.subr.bf16.mxu0 0
    %2351 = vmatpush2.bf16.msra.mxu0 %v2270
    %2352 = vmatprep.subr.bf16.mxu0 0
    %2353 = vmatpush2.bf16.msra.mxu0 %v2269
    %2354 = vmatprep.subr.bf16.mxu0 0
    %2355 = vmatpush2.bf16.msra.mxu0 %v2268
    %2356 = vmatprep.mubr.bf16.mxu0 %v2058
    %2357 = vmatmul.mubr.bf16.gmra.mxu0 %v2057
    %v2358 = vpop.f32.mrf.mxu0
    %v2359 = vadd.f32 %v2130, %v2358
    %v2360 = vpop.f32.mrf.mxu0
    %v2361 = vpop.f32.mrf.mxu0
    %v2362 = vadd.f32 %v2130, %v2361
    %v2363 = vpop.f32.mrf.mxu0
    %2364 = vdwg.mxu0
    %2365 = vmatprep.subr.bf16.mxu0 0
    %2366 = vmatpush1.bf16.msra.mxu0 %v2283
    %2367 = vmatprep.subr.bf16.mxu0 0
    %2368 = vmatpush1.bf16.msra.mxu0 %v2282
    %2369 = vmatprep.subr.bf16.mxu0 0
    %2370 = vmatpush1.bf16.msra.mxu0 %v2281
    %2371 = vmatprep.subr.bf16.mxu0 0
    %2372 = vmatpush1.bf16.msra.mxu0 %v2280
    %2373 = vmatprep.subr.bf16.mxu0 0
    %2374 = vmatpush1.bf16.msra.mxu0 %v2279
    %2375 = vmatprep.subr.bf16.mxu0 0
    %2376 = vmatpush1.bf16.msra.mxu0 %v2278
    %2377 = vmatprep.subr.bf16.mxu0 0
    %2378 = vmatpush1.bf16.msra.mxu0 %v2277
    %2379 = vmatprep.subr.bf16.mxu0 0
    %2380 = vmatpush1.bf16.msra.mxu0 %v2276
    %2381 = vmatprep.subr.bf16.mxu0 0
    %2382 = vmatpush2.bf16.msra.mxu0 %v2291
    %2383 = vmatprep.subr.bf16.mxu0 0
    %2384 = vmatpush2.bf16.msra.mxu0 %v2290
    %2385 = vmatprep.subr.bf16.mxu0 0
    %2386 = vmatpush2.bf16.msra.mxu0 %v2289
    %2387 = vmatprep.subr.bf16.mxu0 0
    %2388 = vmatpush2.bf16.msra.mxu0 %v2288
    %2389 = vmatprep.subr.bf16.mxu0 0
    %2390 = vmatpush2.bf16.msra.mxu0 %v2287
    %2391 = vmatprep.subr.bf16.mxu0 0
    %2392 = vmatpush2.bf16.msra.mxu0 %v2286
    %2393 = vmatprep.subr.bf16.mxu0 0
    %2394 = vmatpush2.bf16.msra.mxu0 %v2285
    %2395 = vmatprep.subr.bf16.mxu0 0
    %2396 = vmatpush2.bf16.msra.mxu0 %v2284
    %2397 = vmatprep.mubr.bf16.mxu0 %v2060
    %2398 = vmatmul.mubr.bf16.gmra.mxu0 %v2059
    %v2399 = vpop.f32.mrf.mxu0
    %v2400 = vadd.f32 %v2359, %v2399
    %v2401 = vpop.f32.mrf.mxu0
    %v2402 = vpop.f32.mrf.mxu0
    %v2403 = vadd.f32 %v2362, %v2402
    %v2404 = vpop.f32.mrf.mxu0
    %2405 = vdwg.mxu0
    %v2406 = vmax.f32 %v2400, 0.0
    %v2407 = vmax.f32 %v2403, 0.0
    %v2408 = vpack.c.bf16 %v2407, %v2406
    %v2409 = vld [vmem:[#allocation10] sm:$0xf]
    %v2410 = vld [vmem:[#allocation10 + $0x4] sm:$0xf]
    %v2411 = vld [vmem:[#allocation10 + $0x8] sm:$0xf]
    %v2412 = vld [vmem:[#allocation10 + $0xc] sm:$0xf]
    %v2413 = vld [vmem:[#allocation10 + $0x10] sm:$0xf]
    %v2414 = vld [vmem:[#allocation10 + $0x14] sm:$0xf]
    %v2415 = vld [vmem:[#allocation10 + $0x18] sm:$0xf]
    %v2416 = vld [vmem:[#allocation10 + $0x1c] sm:$0xf]
    %v2417 = vld [vmem:[#allocation10 + $0x20] sm:$0xf]
    %v2418 = vld [vmem:[#allocation10 + $0x24] sm:$0xf]
    %v2419 = vld [vmem:[#allocation10 + $0x28] sm:$0xf]
    %v2420 = vld [vmem:[#allocation10 + $0x2c] sm:$0xf]
    %v2421 = vld [vmem:[#allocation10 + $0x30] sm:$0xf]
    %v2422 = vld [vmem:[#allocation10 + $0x34] sm:$0xf]
    %v2423 = vld [vmem:[#allocation10 + $0x38] sm:$0xf]
    %v2424 = vld [vmem:[#allocation10 + $0x3c] sm:$0xf]
    %v2425 = vld [vmem:[%s8] sm:$0x1]
    %v2427 = vlaneseq
    %v2428 = vshrl.u32 %v2427, 7
    %v2429 = vsub.s32 0, %v2428
    %v2430 = vrot.slane %v2425, %v2429
    %v2448 = vunpack.c.l.b16 %v2409
    %v2449 = vunpack.c.l.b16 %v2410
    %v2450 = vunpack.c.l.b16 %v2411
    %v2451 = vunpack.c.l.b16 %v2412
    %v2452 = vunpack.c.l.b16 %v2413
    %v2453 = vunpack.c.l.b16 %v2414
    %v2454 = vunpack.c.l.b16 %v2415
    %v2455 = vunpack.c.l.b16 %v2416
    %v2456 = vunpack.c.l.b16 %v2417
    %v2457 = vunpack.c.l.b16 %v2418
    %v2458 = vunpack.c.l.b16 %v2419
    %v2459 = vunpack.c.l.b16 %v2420
    %v2460 = vunpack.c.l.b16 %v2421
    %v2461 = vunpack.c.l.b16 %v2422
    %v2462 = vunpack.c.l.b16 %v2423
    %v2463 = vunpack.c.l.b16 %v2424
    %v2464 = vpack.c.b16 %v2449, %v2448
    %v2465 = vpack.c.b16 %v2451, %v2450
    %v2466 = vpack.c.b16 %v2453, %v2452
    %v2467 = vpack.c.b16 %v2455, %v2454
    %v2468 = vpack.c.b16 %v2457, %v2456
    %v2469 = vpack.c.b16 %v2459, %v2458
    %v2470 = vpack.c.b16 %v2461, %v2460
    %v2471 = vpack.c.b16 %v2463, %v2462
    %2480 = vmatprep.subr.bf16.mxu0 0
    %2481 = vmatpush1.bf16.msra.mxu0 %v2471
    %2482 = vmatprep.subr.bf16.mxu0 0
    %2483 = vmatpush1.bf16.msra.mxu0 %v2470
    %2484 = vmatprep.subr.bf16.mxu0 0
    %2485 = vmatpush1.bf16.msra.mxu0 %v2469
    %2486 = vmatprep.subr.bf16.mxu0 0
    %2487 = vmatpush1.bf16.msra.mxu0 %v2468
    %2488 = vmatprep.subr.bf16.mxu0 0
    %2489 = vmatpush1.bf16.msra.mxu0 %v2467
    %2490 = vmatprep.subr.bf16.mxu0 0
    %2491 = vmatpush1.bf16.msra.mxu0 %v2466
    %2492 = vmatprep.subr.bf16.mxu0 0
    %2493 = vmatpush1.bf16.msra.mxu0 %v2465
    %2494 = vmatprep.subr.bf16.mxu0 0
    %2495 = vmatpush1.bf16.msra.mxu0 %v2464
    %2496 = vmatprep.subr.bf16.mxu0 0
    %2497 = vmatpush2.bf16.msra.mxu0 0
    %2498 = vmatprep.subr.bf16.mxu0 0
    %2499 = vmatpush2.bf16.msra.mxu0 0
    %2500 = vmatprep.subr.bf16.mxu0 0
    %2501 = vmatpush2.bf16.msra.mxu0 0
    %2502 = vmatprep.subr.bf16.mxu0 0
    %2503 = vmatpush2.bf16.msra.mxu0 0
    %2504 = vmatprep.subr.bf16.mxu0 0
    %2505 = vmatpush2.bf16.msra.mxu0 0
    %2506 = vmatprep.subr.bf16.mxu0 0
    %2507 = vmatpush2.bf16.msra.mxu0 0
    %2508 = vmatprep.subr.bf16.mxu0 0
    %2509 = vmatpush2.bf16.msra.mxu0 0
    %2510 = vmatprep.subr.bf16.mxu0 0
    %2511 = vmatpush2.bf16.msra.mxu0 0
    %2512 = vmatprep.mubr.bf16.mxu0 0
    %2513 = vmatmul.mubr.bf16.gmra.mxu0 %v2408
    %v2514 = vpop.f32.mrf.mxu0
    %v2515 = vadd.f32 %v2430, %v2514
    %v2516 = vpop.f32.mrf.mxu0
    %v2517 = vpop.f32.mrf.mxu0
    %v2518 = vadd.f32 %v2430, %v2517
    %v2519 = vpop.f32.mrf.mxu0
    %2520 = vdwg.mxu0
    %vm2521 = vcmask 15360
    %2522 = vst.msk [vmem:[#allocation12] sm:$0xff] %vm2521, %v2515
    %2523 = vst.msk [vmem:[#allocation12 + $0x8] sm:$0xff] %vm2521, %v2518
    // Predicated region
    $region62: #{grounding_forward.1} parent=1 // pred_check
      _
    $region63: #{grounding_forward.1} parent=1 // pred_check_branch
      %2525 = sbr.rel (0) target = $region65
    $region64: #{grounding_forward.1} parent=1 // pred_region
      // Predicated region
      $region66: #{grounding_forward.1} parent=64 // pred_check
        _
      $region67: #{grounding_forward.1} parent=64 // pred_check_branch
        %2527 = sbr.rel (0) target = $region69
      $region68: #{grounding_forward.1} parent=64 // pred_region
        // Predicated region
        $region70: #{grounding_forward.1} parent=68 // pred_check
          _
        $region71: #{grounding_forward.1} parent=68 // pred_check_branch
          %2529 = sbr.rel (0) target = $region73
        $region72: #{grounding_forward.1} parent=68 // pred_region
          // Predicated region
          $region85: #{grounding_forward.1} parent=72 // pred_check
            _
          $region86: #{grounding_forward.1} parent=72 // pred_check_branch
            %2545 = sbr.rel (0) target = $region88
          $region87: #{grounding_forward.1} parent=72 // pred_region
            loop: start=0, step=1, limit=1
            $region89: #{grounding_forward.1} parent=87 // loop_pre_header
              _
            $region90: #{grounding_forward.1} parent=87 // loop_header
              %s2547 = sphi 0, %s2551
              %p2548 = scmp.ge.s32.totalorder %s2547, 1
              %s2552 = sphi [#allocation12], [#allocation12]
              %s2553 = sphi %s9, %s9
            $region91: #{grounding_forward.1} parent=87 // loop_header_branch
              %2550 = sbr.rel (%p2548) target = $region95
            $region92: #{grounding_forward.1} parent=87 // loop_body
              %v2554 = vld [vmem:[%s2552] sm:$0xff]
              %2555 = vst [vmem:[%s2553] sm:$0xff] %v2554
            $region93: #{grounding_forward.1} parent=87 // loop_footer
              %s2551 = sadd.s32 1, %s2547
            $region94: #{grounding_forward.1} parent=87 // loop_footer_branch
              %2546 = sbr.rel target = $region90
            $region95: #{grounding_forward.1} parent=87 // loop_exit
              _
          $region88: #{grounding_forward.1} parent=72 // pred_fallthru
            _
          // Predicated region
          $region96: #{grounding_forward.1} parent=72 // pred_check
            _
          $region97: #{grounding_forward.1} parent=72 // pred_check_branch
            %2557 = sbr.rel target = $region99
          $region98: #{grounding_forward.1} parent=72 // pred_region
            _
          $region99: #{grounding_forward.1} parent=72 // pred_fallthru
            _
        $region73: #{grounding_forward.1} parent=68 // pred_fallthru
          _
        // Predicated region
        $region74: #{grounding_forward.1} parent=68 // pred_check
          _
        $region75: #{grounding_forward.1} parent=68 // pred_check_branch
          %2531 = sbr.rel target = $region77
        $region76: #{grounding_forward.1} parent=68 // pred_region
          %s2533 = ssub.s32 256, 1
          loop: start=0, step=1, limit=1
          $region78: #{grounding_forward.1} parent=76 // loop_pre_header
            _
          $region79: #{grounding_forward.1} parent=76 // loop_header
            %s2535 = sphi 0, %s2539
            %p2536 = scmp.ge.s32.totalorder %s2535, 1
            %s2540 = sphi [#allocation12], [#allocation12]
            %s2541 = sphi %s9, %s9
          $region80: #{grounding_forward.1} parent=76 // loop_header_branch
            %2538 = sbr.rel (%p2536) target = $region84
          $region81: #{grounding_forward.1} parent=76 // loop_body
            %v2542 = vld [vmem:[%s2540] sm:%s2533]
            %2543 = vst [vmem:[%s2541] sm:%s2533] %v2542
          $region82: #{grounding_forward.1} parent=76 // loop_footer
            %s2539 = sadd.s32 1, %s2535
          $region83: #{grounding_forward.1} parent=76 // loop_footer_branch
            %2534 = sbr.rel target = $region79
          $region84: #{grounding_forward.1} parent=76 // loop_exit
            _
        $region77: #{grounding_forward.1} parent=68 // pred_fallthru
          _
      $region69: #{grounding_forward.1} parent=64 // pred_fallthru
        _
      %2558 = vnop
    $region65: #{grounding_forward.1} parent=1 // pred_fallthru
      _
    // Predicated region
    $region100: #{grounding_forward.1} parent=1 // pred_check
      _
    $region101: #{grounding_forward.1} parent=1 // pred_check_branch
      %2560 = sbr.rel (0) target = $region103
    $region102: #{grounding_forward.1} parent=1 // pred_region
      _
    $region103: #{grounding_forward.1} parent=1 // pred_fallthru
      _
    %2561 = vsyncpa [#allocation3], 1
    %2562 = vsyncpa [#allocation5], 1
    %2563 = vsyncpa [#allocation8], 1
    %2564 = vsyncpa [#allocation11], 1

</llo_original>
